<compile_context>
chip_gen: v5e
topology: v5e:2x2
jax: 0.10.0
libtpu: 0.0.40
codegen_flags: <defaults>
</compile_context>

<pallas_src>
import functools
import math

import jax
import jax.numpy as jnp
from jax import lax
from jax.experimental import pallas as pl
from jax.experimental.pallas import tpu as pltpu


def _round_up(x: int, m: int) -> int:
    return ((x + m - 1) // m) * m


def _sinusoidal_kernel(t_ref, o_ref, *, half: int, neg_scale: float):
    """One batch tile.

    t_ref: (1, 1, TB) f32  lane-dense time values for this tile
    o_ref: (TB, 2*half)    output tile (TB % 128 == 0, 2*half % 128 == 0)
    """
    t_row = t_ref[0]                                                  # (1, TB)

    # Frequencies as a sublane column: exp(k * -log(10000)/(half-1)), k=0..half-1.
    # Only `half` EUP ops per grid step -> negligible next to the payload sin/cos.
    k = lax.broadcasted_iota(jnp.int32, (half, 1), 0).astype(jnp.float32)
    freq_col = jnp.exp(k * neg_scale)                                 # (half, 1)

    # Transposed arguments: args_t[d, b] = time[b] * freqs[d].
    args_t = freq_col * t_row                                         # (half, TB)

    # sin on the first half, cos on the second half: exactly ONE transcendental
    # per output element.  Concatenate along sublanes (both halves 8-aligned),
    # then a single aligned XLU transpose and one full-width lane-dense store.
    emb_t = jnp.concatenate([jnp.sin(args_t), jnp.cos(args_t)], axis=0)  # (dim, TB)
    o_ref[...] = jnp.transpose(emb_t).astype(o_ref.dtype)             # (TB, dim)


def sinusoidal_position_embeddings(time: jax.Array, dim: int, *,
                                   out_dtype=jnp.float32,
                                   block_rows: int | None = None) -> jax.Array:
    """time: (B,) -> (B, dim) sinusoidal embeddings (matches the PyTorch module)."""
    if dim % 2 != 0 or dim < 4:
        raise ValueError("dim must be even and >= 4 (the module divides by half - 1)")
    time = jnp.asarray(time, jnp.float32)
    if time.ndim != 1:
        raise ValueError("time must be rank-1 (a batch of scalar timesteps)")
    B = time.shape[0]
    half = dim // 2
    neg_scale = -math.log(10000.0) / (half - 1)

    if dim % 128 != 0:
        # Unaligned widths: tiny launch, better fused by XLA into the consumer
        # than paying a standalone pallas_call (see header note).
        return _reference(time, dim).astype(out_dtype)

    # ---- batch tiling --------------------------------------------------------
    # ~1 MiB of f32 output per grid step (measured ~85% of the HBM roofline);
    # tile rows are a multiple of 128 so the time row is lane-dense and both the
    # in-kernel transpose and the output store are fully aligned / unmasked.
    if block_rows is None:
        tb = (1 << 20) // (dim * 4)                # rows per ~1 MiB f32 output tile
        tb = max(128, min(4096, (tb // 128) * 128))
        tb = min(tb, _round_up(B, 128))            # don't over-pad small batches
        # v7x megacore: the "parallel" grid axis is split across the two
        # TensorCores -- make sure there are >= 2 grid steps for biggish B.
        if B >= 1024 and pl.cdiv(B, tb) < 2:
            tb = _round_up(pl.cdiv(B, 2), 128)
    else:
        tb = max(128, _round_up(block_rows, 128))
        tb = min(tb, _round_up(B, 128))

    num_tiles = pl.cdiv(B, tb)
    b_pad = num_tiles * tb

    t_pad = time if b_pad == B else jnp.pad(time, (0, b_pad - B))
    # Lane-dense layout: each grid step reads one dense (1, tb) row of timesteps.
    t_tiles = t_pad.reshape(num_tiles, 1, tb)

    kernel = functools.partial(_sinusoidal_kernel, half=half, neg_scale=neg_scale)
    out = pl.pallas_call(
        kernel,
        out_shape=jax.ShapeDtypeStruct((b_pad, dim), out_dtype),
        grid_spec=pltpu.PrefetchScalarGridSpec(
            num_scalar_prefetch=0,
            grid=(num_tiles,),
            in_specs=[pl.BlockSpec((1, 1, tb), lambda i: (i, 0, 0))],
            out_specs=pl.BlockSpec((tb, dim), lambda i: (i, 0)),
        ),
        compiler_params=pltpu.CompilerParams(
            dimension_semantics=("parallel",)),
    )(t_tiles)

    return out if b_pad == B else out[:B]


def _reference(time: jax.Array, dim: int) -> jax.Array:
    """Faithful JAX port of the PyTorch module."""
    half = dim // 2
    emb = math.log(10000.0) / (half - 1)
    emb = jnp.exp(jnp.arange(half, dtype=jnp.float32) * -emb)
    emb = jnp.asarray(time, jnp.float32)[:, None] * emb[None, :]
    return jnp.concatenate([jnp.sin(emb), jnp.cos(emb)], axis=-1)


if __name__ == "__main__":
    k1, k2 = jax.random.split(jax.random.PRNGKey(0))

    # Tolerance note: the kernel evaluates exp with Mosaic's EUP routine while the
    # reference uses XLA's; a 1-2 ulp frequency difference is amplified by
    # timesteps up to 1e3 into ~1e-4 of phase.  Structural bugs (wrong half /
    # transposition / ordering) would show up as O(1) errors, so 5e-4 is a
    # meaningful check on outputs bounded by 1.
    TOL = dict(atol=5e-4, rtol=1e-4)

    # Typical diffusion time-embedding width; small batch (single grid step).
    B, dim = 8, 128
    time = jax.random.uniform(k1, (B,), jnp.float32, minval=0.0, maxval=1000.0)
    out = jax.block_until_ready(sinusoidal_position_embeddings(time, dim))
    ref = _reference(time, dim)
    assert out.shape == (B, dim) and out.dtype == jnp.float32
    assert jnp.allclose(out, ref, **TOL), "mismatch vs reference (small batch)"

    # Multi-step pipelined grid + batch padding (B not a multiple of the tile).
    B2 = 300
    time2 = jax.random.uniform(k2, (B2,), jnp.float32, minval=0.0, maxval=1000.0)
    out2 = jax.block_until_ready(
        sinusoidal_position_embeddings(time2, dim, block_rows=128))
    ref2 = _reference(time2, dim)
    assert out2.shape == (B2, dim)
    assert jnp.allclose(out2, ref2, **TOL), "mismatch vs reference (gridded batch)"

    print("KERNEL_OK")
</pallas_src>

<mosaic_0001>
module attributes {stable_mosaic.version = 11 : i64} {
  func.func @_sinusoidal_kernel(%arg0: i32, %arg1: memref<1x1x128xf32, #tpu.memory_space<vmem>>, %arg2: memref<128x128xf32, #tpu.memory_space<vmem>>) attributes {dimension_semantics = [#tpu.dimension_semantics<parallel>], iteration_bounds = array<i64: 1>, scalar_prefetch = 0 : i64, scratch_operands = 0 : i64, tpu.core_type = #tpu.core_type<tc>, window_params = [{transform_indices = @transform_0, window_bounds = array<i64: 1, 1, 128>}, {transform_indices = @transform_1, window_bounds = array<i64: 128, 128>}]} {
    %c0 = arith.constant 0 : index
    %c0_0 = arith.constant 0 : index
    %c0_1 = arith.constant 0 : index
    %0 = vector.load %arg1[%c0, %c0_0, %c0_1] : memref<1x1x128xf32, #tpu.memory_space<vmem>>, vector<1x1x128xf32>
    %1 = vector.shape_cast %0 : vector<1x1x128xf32> to vector<1x128xf32>
    %2 = tpu.iota {dimensions = array<i32: 0>} : vector<64x1xi32>
    %3 = arith.sitofp %2 : vector<64x1xi32> to vector<64x1xf32>
    %cst = arith.constant -0.146195874 : f32
    %4 = vector.broadcast %cst : f32 to vector<64x1xf32>
    %5 = arith.mulf %3, %4 : vector<64x1xf32>
    %6 = math.exp %5 : vector<64x1xf32>
    %7 = vector.broadcast %6 : vector<64x1xf32> to vector<64x128xf32>
    %8 = vector.broadcast %1 : vector<1x128xf32> to vector<64x128xf32>
    %9 = arith.mulf %7, %8 : vector<64x128xf32>
    %10 = math.sin %9 : vector<64x128xf32>
    %11 = math.cos %9 : vector<64x128xf32>
    %12 = tpu.concatenate %10, %11 in 0 : vector<64x128xf32>, vector<64x128xf32> -> vector<128x128xf32>
    %13 = tpu.transpose %12, [1, 0] : vector<128x128xf32> -> vector<128x128xf32>
    %c0_2 = arith.constant 0 : index
    %c0_3 = arith.constant 0 : index
    %14 = vector.load %arg2[%c0_2, %c0_3] : memref<128x128xf32, #tpu.memory_space<vmem>>, vector<128x128xf32>
    tpu.vector_store %arg2[%c0_2, %c0_3], %13 {strides = array<i32>} : memref<128x128xf32, #tpu.memory_space<vmem>>, vector<128x128xf32>,
    return
  }
  func.func @transform_0(%arg0: i32) -> (i32, i32, i32) {
    %c0_i32 = arith.constant 0 : i32
    %c0_i32_0 = arith.constant 0 : i32
    %c0_i32_1 = arith.constant 0 : i32
    return %arg0, %c0_i32, %c0_i32_0 : i32, i32, i32
  }
  func.func @transform_1(%arg0: i32) -> (i32, i32) {
    %c0_i32 = arith.constant 0 : i32
    %c0_i32_0 = arith.constant 0 : i32
    return %arg0, %c0_i32 : i32, i32
  }
}

</mosaic_0001>

<llo_original>
// kernel: tpu_custom_call.1
$region0: #{tpu_custom_call.1}
  #allocation0 [shape = 'u32[]', space=smem, size = 0x4, offset = 0x4, fixed_abs, tag = 'smem constant byte address 0x4 - core index']
  #allocation1 [shape = 'u32[72,128]{1,0:T(1,128)}', space=vmem, size = 0x9000, scoped, tag = 'internal scratch']
  %s0 = inlined_call_operand.hbm [shape: f32[1,1,128], index: 0, kind: input, shape index: {}]
  %s1 = inlined_call_operand.hbm [shape: f32[128,128], index: 1, kind: output, shape index: {}]
  %s2 = sld [smem:[#allocation0]]
  $region18: #{tpu_custom_call.1} parent=0
    _
  %s4 = ssub.s32 1, %s2
  %s5 = scalar_select 0, %s4, %s2
  $region1: #{tpu_custom_call.1} parent=0
    #allocation2 [shape = 'u8[512]{0}', space=vmem, size = 0x400, scoped, tag = 'input window, operand 0, single buffered']
    #allocation3 [shape = 's32[1]{0}', space=sflag, size = 0x4, scoped, tag = 'scoped memory for tpu_custom_call.1']
    #allocation4 [shape = 's32[1]{0}', space=sflag, size = 0x4, scoped, tag = 'scoped memory for tpu_custom_call.1']
    #allocation5 [shape = 'u8[65536]{0}', space=vmem, size = 0x10000, scoped, tag = 'output window, operand 0, single buffered']
    %6 = vsyncpa [#allocation3], 0
    %7 = vsyncpa [#allocation4], 0
    // Predicated region
    $region2: #{tpu_custom_call.1} parent=1 // pred_check
      _
    $region3: #{tpu_custom_call.1} parent=1 // pred_check_branch
      %9 = sbr.rel (0) target = $region5
    $region4: #{tpu_custom_call.1} parent=1 // pred_region
      %11 = vsyncadd [#allocation3], 0
      %s13 = sshll.u32 %s0, 4
      %s14 = int_to_ptr.hbm [resolvable:$true] %s13
      %s15 = sshll.u32 [#allocation2], 4
      %s16 = int_to_ptr.vmem [resolvable:$true] %s15
      %18 = dma.hbm_to_vmem [thread:$0]  %s14, 16, %s16, [#allocation3]
    $region5: #{tpu_custom_call.1} parent=1 // pred_fallthru
      _
    // Predicated region
    $region6: #{tpu_custom_call.1} parent=1 // pred_check
      _
    $region7: #{tpu_custom_call.1} parent=1 // pred_check_branch
      %20 = sbr.rel (0) target = $region9
    $region8: #{tpu_custom_call.1} parent=1 // pred_region
      %22 = dma.done [#allocation3], 16
    $region9: #{tpu_custom_call.1} parent=1 // pred_fallthru
      _
    %v23 = vld [vmem:[#allocation2] sm:$0x1]
    %v24 = vlaneseq
    %v25 = vshrl.u32 %v24, 7
    %v26 = vadd.s32 %v25, 8
    %v27 = vadd.s32 %v25, 16
    %v28 = vadd.s32 %v25, 24
    %v29 = vadd.s32 %v25, 32
    %v30 = vadd.s32 %v25, 40
    %v31 = vadd.s32 %v25, 48
    %v32 = vadd.s32 %v25, 56
    %v33 = vcvt.s32.f32 %v25
    %v34 = vcvt.s32.f32 %v26
    %v35 = vcvt.s32.f32 %v27
    %v36 = vcvt.s32.f32 %v28
    %v37 = vcvt.s32.f32 %v29
    %v38 = vcvt.s32.f32 %v30
    %v39 = vcvt.s32.f32 %v31
    %v40 = vcvt.s32.f32 %v32
    %v41 = vmul.f32 %v33, -0.14619587
    %v42 = vmul.f32 %v34, -0.14619587
    %v43 = vmul.f32 %v35, -0.14619587
    %v44 = vmul.f32 %v36, -0.14619587
    %v45 = vmul.f32 %v37, -0.14619587
    %v46 = vmul.f32 %v38, -0.14619587
    %v47 = vmul.f32 %v39, -0.14619587
    %v48 = vmul.f32 %v40, -0.14619587
    %v49 = vmul.f32 %v41, 1.442695
    %v50 = vpow.pop %v49
    %v51 = vmul.f32 %v42, 1.442695
    %v52 = vpow.pop %v51
    %v53 = vmul.f32 %v43, 1.442695
    %v54 = vpow.pop %v53
    %v55 = vmul.f32 %v44, 1.442695
    %v56 = vpow.pop %v55
    %v57 = vmul.f32 %v45, 1.442695
    %v58 = vpow.pop %v57
    %v59 = vmul.f32 %v46, 1.442695
    %v60 = vpow.pop %v59
    %v61 = vmul.f32 %v47, 1.442695
    %v62 = vpow.pop %v61
    %v63 = vmul.f32 %v48, 1.442695
    %v64 = vpow.pop %v63
    %v66 = vperm.slane %v23, 0
    %v68 = vmul.f32 %v50, %v66
    %v69 = vmul.f32 %v52, %v66
    %v70 = vmul.f32 %v54, %v66
    %v71 = vmul.f32 %v56, %v66
    %v72 = vmul.f32 %v58, %v66
    %v73 = vmul.f32 %v60, %v66
    %v74 = vmul.f32 %v62, %v66
    %v75 = vmul.f32 %v64, %v66
    %v76 = vand.u32 2147483647, %v68
    %vm77 = vcmp.le.f32.partialorder %v76, 0.7853982
    %vm78 = vcmp.lt.s32.totalorder %v68, 0
    %v79 = vand.u32 %v68, 2139095040
    %v80 = vshrl.u32 %v79, 23
    %v81 = vsub.s32 %v80, 127
    %v82 = vand.u32 2147483647, %v68
    %v83 = vand.u32 %v82, 8388607
    %v84 = vor.u32 %v83, 8388608
    %v85 = vsub.s32 0, %v84
    %v86 = vadd.s32 %v81, 1
    %vm87 = vcmp.gt.s32.totalorder %v86, 0
    %v88 = vsel %vm87, %v86, 0
    %v89 = vshrl.u32 %v88, 5
    %v90 = vand.u32 %v88, 31
    %v91 = vsub.s32 32, %v90
    %v92 = vshrl.u32 683565275, %v91
    %v93 = vshll.u32 683565275, %v90
    %v94 = vshrl.u32 2475754826, %v91
    %v95 = vor.u32 %v93, %v94
    %v96 = vshll.u32 2475754826, %v90
    %v97 = vshrl.u32 2131351028, %v91
    %v98 = vor.u32 %v96, %v97
    %v99 = vshll.u32 2131351028, %v90
    %v100 = vshrl.u32 2102212464, %v91
    %v101 = vor.u32 %v99, %v100
    %v102 = vshll.u32 2102212464, %v90
    %v103 = vshrl.u32 920167782, %v91
    %v104 = vor.u32 %v102, %v103
    %v105 = vshll.u32 920167782, %v90
    %v106 = vshrl.u32 1326507024, %v91
    %v107 = vor.u32 %v105, %v106
    %vm108 = vcmp.lt.s32.totalorder %v89, 1
    %vm109 = vcmp.lt.s32.totalorder %v89, 2
    %vm110 = vcmp.lt.s32.totalorder %v89, 3
    %vm111 = vcmp.lt.s32.totalorder %v89, 4
    %v112 = vsel %vm108, %v92, %v95
    %v113 = vsel %vm111, %v101, 2102212464
    %v114 = vsel %vm110, %v98, %v113
    %v115 = vsel %vm109, %v112, %v114
    %v116 = vsel %vm108, %v95, %v98
    %v117 = vsel %vm111, %v104, 920167782
    %v118 = vsel %vm110, %v101, %v117
    %v119 = vsel %vm109, %v116, %v118
    %v120 = vsel %vm108, %v98, %v101
    %v121 = vsel %vm111, %v107, 1326507024
    %v122 = vsel %vm110, %v104, %v121
    %v123 = vsel %vm109, %v120, %v122
    %v124 = vshll.u32 %v84, 8
    %v125 = vand.u32 %v124, 65535
    %v126 = vshrl.u32 %v124, 16
    %v127 = vand.u32 %v123, 65535
    %v128 = vshrl.u32 %v123, 16
    %v129 = vmul.u32 %v125, %v127
    %v130 = vmul.u32 %v125, %v128
    %v131 = vmul.u32 %v126, %v127
    %v132 = vmul.u32 %v126, %v128
    %v133 = vshll.u32 %v130, 16
    %v134 = vshrl.u32 %v130, 16
    %v135 = vshll.u32 %v131, 16
    %v136 = vshrl.u32 %v131, 16
    %vm137 = vc.u32 %v129, %v133
    %v138 = vsel %vm137, 1, 0
    %v139 = vadd.s32 %v129, %v133
    %v140 = vadd.s32 %v132, %v138
    %vm141 = vc.u32 %v139, %v135
    %v142 = vsel %vm141, 1, 0
    %v143 = vadd.s32 %v139, %v135
    %v144 = vadd.s32 %v140, %v142
    %v145 = vadd.s32 %v144, %v134
    %v146 = vadd.s32 %v145, %v136
    %v147 = vand.u32 %v124, 65535
    %v148 = vshrl.u32 %v124, 16
    %v149 = vand.u32 %v119, 65535
    %v150 = vshrl.u32 %v119, 16
    %v151 = vmul.u32 %v147, %v149
    %v152 = vmul.u32 %v147, %v150
    %v153 = vmul.u32 %v148, %v149
    %v154 = vmul.u32 %v148, %v150
    %v155 = vshll.u32 %v152, 16
    %v156 = vshrl.u32 %v152, 16
    %v157 = vshll.u32 %v153, 16
    %v158 = vshrl.u32 %v153, 16
    %vm159 = vc.u32 %v151, %v155
    %v160 = vsel %vm159, 1, 0
    %v161 = vadd.s32 %v151, %v155
    %v162 = vadd.s32 %v154, %v160
    %vm163 = vc.u32 %v161, %v157
    %v164 = vsel %vm163, 1, 0
    %v165 = vadd.s32 %v161, %v157
    %v166 = vadd.s32 %v162, %v164
    %v167 = vadd.s32 %v166, %v156
    %v168 = vadd.s32 %v167, %v158
    %v169 = vmul.u32 %v124, %v115
    %v170 = vadd.s32 %v146, %v165
    %vm171 = vc.u32 %v146, %v165
    %v172 = vadd.s32 %v168, 1
    %v173 = vsel %vm171, %v172, %v168
    %v174 = vadd.s32 %v169, %v173
    %v175 = vadd.s32 %v174, 536870912
    %v176 = vshrl.u32 %v175, 30
    %v177 = vshll.u32 %v176, 30
    %v178 = vsub.s32 %v174, %v177
    %vm179 = vcmp.lt.s32.totalorder %v178, 0
    %v180 = vsub.s32 0, %v178
    %v181 = vsel %vm179, %v180, %v178
    %v182 = vclz %v181
    %v183 = vsub.s32 %v182, 2
    %vm184 = vcmp.gt.s32.totalorder 0, %v183
    %v185 = vsel %vm184, 0, %v183
    %v186 = vsub.s32 32, %v185
    %v187 = vshll.u32 %v178, %v185
    %v188 = vshrl.u32 %v170, %v186
    %v189 = vor.u32 %v187, %v188
    %v190 = vsub.s32 4294967266, %v185
    %v191 = vadd.s32 %v190, 127
    %v192 = vshll.u32 %v191, 23
    %v193 = vor.u32 4788187, %v192
    %v194 = vand.u32 2147483647, %v193
    %v196 = vcvt.s32.f32 %v189
    %v197 = vmul.f32 %v196, %v194
    %v198 = vxor.u32 %v197, 2147483648
    %v199 = vsel %vm78, %v198, %v197
    %v200 = vsub.s32 4, %v176
    %v201 = vsel %vm78, %v200, %v176
    %v202 = vsel %vm77, %v68, %v199
    %v203 = vsel %vm77, 0, %v201
    %v204 = vmul.f32 %v202, %v202
    %v205 = vmul.f32 %v204, -0.001358992
    %v206 = vadd.f32 %v205, 0.041655596
    %v207 = vmul.f32 %v204, %v206
    %v208 = vadd.f32 %v207, -0.4999988
    %v209 = vmul.f32 %v204, %v208
    %v210 = vadd.f32 1.0, %v209
    %v211 = vmul.f32 %v202, %v202
    %v212 = vmul.f32 %v211, -0.00019511016
    %v213 = vadd.f32 %v212, 0.008332121
    %v214 = vmul.f32 %v211, %v213
    %v215 = vadd.f32 %v214, -0.16666654
    %v216 = vmul.f32 %v211, %v215
    %v217 = vadd.f32 %v216, 1.0
    %v218 = vmul.f32 %v217, %v202
    %vm219 = vweird.f32 %v68
    %v220 = vadd.s32 %v203, 3
    %v221 = vand.u32 %v220, 3
    %vm222 = vcmp.lt.s32.totalorder %v221, 2
    %vm223 = vcmp.eq.s32.totalorder %v221, 0
    %v224 = vxor.u32 %v218, 2147483648
    %v225 = vsel %vm223, %v210, %v224
    %vm226 = vcmp.eq.s32.totalorder %v221, 2
    %v227 = vxor.u32 %v210, 2147483648
    %v228 = vsel %vm226, %v227, %v218
    %v229 = vsel %vm222, %v225, %v228
    %v230 = vsel %vm219, nan, %v229
    %v231 = vand.u32 2147483647, %v69
    %vm232 = vcmp.le.f32.partialorder %v231, 0.7853982
    %vm233 = vcmp.lt.s32.totalorder %v69, 0
    %v234 = vand.u32 %v69, 2139095040
    %v235 = vshrl.u32 %v234, 23
    %v236 = vsub.s32 %v235, 127
    %v237 = vand.u32 2147483647, %v69
    %v238 = vand.u32 %v237, 8388607
    %v239 = vor.u32 %v238, 8388608
    %v240 = vsub.s32 0, %v239
    %v241 = vadd.s32 %v236, 1
    %vm242 = vcmp.gt.s32.totalorder %v241, 0
    %v243 = vsel %vm242, %v241, 0
    %v244 = vshrl.u32 %v243, 5
    %v245 = vand.u32 %v243, 31
    %v246 = vsub.s32 32, %v245
    %v247 = vshrl.u32 683565275, %v246
    %v248 = vshll.u32 683565275, %v245
    %v249 = vshrl.u32 2475754826, %v246
    %v250 = vor.u32 %v248, %v249
    %v251 = vshll.u32 2475754826, %v245
    %v252 = vshrl.u32 2131351028, %v246
    %v253 = vor.u32 %v251, %v252
    %v254 = vshll.u32 2131351028, %v245
    %v255 = vshrl.u32 2102212464, %v246
    %v256 = vor.u32 %v254, %v255
    %v257 = vshll.u32 2102212464, %v245
    %v258 = vshrl.u32 920167782, %v246
    %v259 = vor.u32 %v257, %v258
    %v260 = vshll.u32 920167782, %v245
    %v261 = vshrl.u32 1326507024, %v246
    %v262 = vor.u32 %v260, %v261
    %vm263 = vcmp.lt.s32.totalorder %v244, 1
    %vm264 = vcmp.lt.s32.totalorder %v244, 2
    %vm265 = vcmp.lt.s32.totalorder %v244, 3
    %vm266 = vcmp.lt.s32.totalorder %v244, 4
    %v267 = vsel %vm263, %v247, %v250
    %v268 = vsel %vm266, %v256, 2102212464
    %v269 = vsel %vm265, %v253, %v268
    %v270 = vsel %vm264, %v267, %v269
    %v271 = vsel %vm263, %v250, %v253
    %v272 = vsel %vm266, %v259, 920167782
    %v273 = vsel %vm265, %v256, %v272
    %v274 = vsel %vm264, %v271, %v273
    %v275 = vsel %vm263, %v253, %v256
    %v276 = vsel %vm266, %v262, 1326507024
    %v277 = vsel %vm265, %v259, %v276
    %v278 = vsel %vm264, %v275, %v277
    %v279 = vshll.u32 %v239, 8
    %v280 = vand.u32 %v279, 65535
    %v281 = vshrl.u32 %v279, 16
    %v282 = vand.u32 %v278, 65535
    %v283 = vshrl.u32 %v278, 16
    %v284 = vmul.u32 %v280, %v282
    %v285 = vmul.u32 %v280, %v283
    %v286 = vmul.u32 %v281, %v282
    %v287 = vmul.u32 %v281, %v283
    %v288 = vshll.u32 %v285, 16
    %v289 = vshrl.u32 %v285, 16
    %v290 = vshll.u32 %v286, 16
    %v291 = vshrl.u32 %v286, 16
    %vm292 = vc.u32 %v284, %v288
    %v293 = vsel %vm292, 1, 0
    %v294 = vadd.s32 %v284, %v288
    %v295 = vadd.s32 %v287, %v293
    %vm296 = vc.u32 %v294, %v290
    %v297 = vsel %vm296, 1, 0
    %v298 = vadd.s32 %v294, %v290
    %v299 = vadd.s32 %v295, %v297
    %v300 = vadd.s32 %v299, %v289
    %v301 = vadd.s32 %v300, %v291
    %v302 = vand.u32 %v279, 65535
    %v303 = vshrl.u32 %v279, 16
    %v304 = vand.u32 %v274, 65535
    %v305 = vshrl.u32 %v274, 16
    %v306 = vmul.u32 %v302, %v304
    %v307 = vmul.u32 %v302, %v305
    %v308 = vmul.u32 %v303, %v304
    %v309 = vmul.u32 %v303, %v305
    %v310 = vshll.u32 %v307, 16
    %v311 = vshrl.u32 %v307, 16
    %v312 = vshll.u32 %v308, 16
    %v313 = vshrl.u32 %v308, 16
    %vm314 = vc.u32 %v306, %v310
    %v315 = vsel %vm314, 1, 0
    %v316 = vadd.s32 %v306, %v310
    %v317 = vadd.s32 %v309, %v315
    %vm318 = vc.u32 %v316, %v312
    %v319 = vsel %vm318, 1, 0
    %v320 = vadd.s32 %v316, %v312
    %v321 = vadd.s32 %v317, %v319
    %v322 = vadd.s32 %v321, %v311
    %v323 = vadd.s32 %v322, %v313
    %v324 = vmul.u32 %v279, %v270
    %v325 = vadd.s32 %v301, %v320
    %vm326 = vc.u32 %v301, %v320
    %v327 = vadd.s32 %v323, 1
    %v328 = vsel %vm326, %v327, %v323
    %v329 = vadd.s32 %v324, %v328
    %v330 = vadd.s32 %v329, 536870912
    %v331 = vshrl.u32 %v330, 30
    %v332 = vshll.u32 %v331, 30
    %v333 = vsub.s32 %v329, %v332
    %vm334 = vcmp.lt.s32.totalorder %v333, 0
    %v335 = vsub.s32 0, %v333
    %v336 = vsel %vm334, %v335, %v333
    %v337 = vclz %v336
    %v338 = vsub.s32 %v337, 2
    %vm339 = vcmp.gt.s32.totalorder 0, %v338
    %v340 = vsel %vm339, 0, %v338
    %v341 = vsub.s32 32, %v340
    %v342 = vshll.u32 %v333, %v340
    %v343 = vshrl.u32 %v325, %v341
    %v344 = vor.u32 %v342, %v343
    %v345 = vsub.s32 4294967266, %v340
    %v346 = vadd.s32 %v345, 127
    %v347 = vshll.u32 %v346, 23
    %v348 = vor.u32 4788187, %v347
    %v349 = vand.u32 2147483647, %v348
    %v351 = vcvt.s32.f32 %v344
    %v352 = vmul.f32 %v351, %v349
    %v353 = vxor.u32 %v352, 2147483648
    %v354 = vsel %vm233, %v353, %v352
    %v355 = vsub.s32 4, %v331
    %v356 = vsel %vm233, %v355, %v331
    %v357 = vsel %vm232, %v69, %v354
    %v358 = vsel %vm232, 0, %v356
    %v359 = vmul.f32 %v357, %v357
    %v360 = vmul.f32 %v359, -0.001358992
    %v361 = vadd.f32 %v360, 0.041655596
    %v362 = vmul.f32 %v359, %v361
    %v363 = vadd.f32 %v362, -0.4999988
    %v364 = vmul.f32 %v359, %v363
    %v365 = vadd.f32 1.0, %v364
    %v366 = vmul.f32 %v357, %v357
    %v367 = vmul.f32 %v366, -0.00019511016
    %v368 = vadd.f32 %v367, 0.008332121
    %v369 = vmul.f32 %v366, %v368
    %v370 = vadd.f32 %v369, -0.16666654
    %v371 = vmul.f32 %v366, %v370
    %v372 = vadd.f32 %v371, 1.0
    %v373 = vmul.f32 %v372, %v357
    %vm374 = vweird.f32 %v69
    %v375 = vadd.s32 %v358, 3
    %v376 = vand.u32 %v375, 3
    %vm377 = vcmp.lt.s32.totalorder %v376, 2
    %vm378 = vcmp.eq.s32.totalorder %v376, 0
    %v379 = vxor.u32 %v373, 2147483648
    %v380 = vsel %vm378, %v365, %v379
    %vm381 = vcmp.eq.s32.totalorder %v376, 2
    %v382 = vxor.u32 %v365, 2147483648
    %v383 = vsel %vm381, %v382, %v373
    %v384 = vsel %vm377, %v380, %v383
    %v385 = vsel %vm374, nan, %v384
    %v386 = vand.u32 2147483647, %v70
    %vm387 = vcmp.le.f32.partialorder %v386, 0.7853982
    %vm388 = vcmp.lt.s32.totalorder %v70, 0
    %v389 = vand.u32 %v70, 2139095040
    %v390 = vshrl.u32 %v389, 23
    %v391 = vsub.s32 %v390, 127
    %v392 = vand.u32 2147483647, %v70
    %v393 = vand.u32 %v392, 8388607
    %v394 = vor.u32 %v393, 8388608
    %v395 = vsub.s32 0, %v394
    %v396 = vadd.s32 %v391, 1
    %vm397 = vcmp.gt.s32.totalorder %v396, 0
    %v398 = vsel %vm397, %v396, 0
    %v399 = vshrl.u32 %v398, 5
    %v400 = vand.u32 %v398, 31
    %v401 = vsub.s32 32, %v400
    %v402 = vshrl.u32 683565275, %v401
    %v403 = vshll.u32 683565275, %v400
    %v404 = vshrl.u32 2475754826, %v401
    %v405 = vor.u32 %v403, %v404
    %v406 = vshll.u32 2475754826, %v400
    %v407 = vshrl.u32 2131351028, %v401
    %v408 = vor.u32 %v406, %v407
    %v409 = vshll.u32 2131351028, %v400
    %v410 = vshrl.u32 2102212464, %v401
    %v411 = vor.u32 %v409, %v410
    %v412 = vshll.u32 2102212464, %v400
    %v413 = vshrl.u32 920167782, %v401
    %v414 = vor.u32 %v412, %v413
    %v415 = vshll.u32 920167782, %v400
    %v416 = vshrl.u32 1326507024, %v401
    %v417 = vor.u32 %v415, %v416
    %vm418 = vcmp.lt.s32.totalorder %v399, 1
    %vm419 = vcmp.lt.s32.totalorder %v399, 2
    %vm420 = vcmp.lt.s32.totalorder %v399, 3
    %vm421 = vcmp.lt.s32.totalorder %v399, 4
    %v422 = vsel %vm418, %v402, %v405
    %v423 = vsel %vm421, %v411, 2102212464
    %v424 = vsel %vm420, %v408, %v423
    %v425 = vsel %vm419, %v422, %v424
    %v426 = vsel %vm418, %v405, %v408
    %v427 = vsel %vm421, %v414, 920167782
    %v428 = vsel %vm420, %v411, %v427
    %v429 = vsel %vm419, %v426, %v428
    %v430 = vsel %vm418, %v408, %v411
    %v431 = vsel %vm421, %v417, 1326507024
    %v432 = vsel %vm420, %v414, %v431
    %v433 = vsel %vm419, %v430, %v432
    %v434 = vshll.u32 %v394, 8
    %v435 = vand.u32 %v434, 65535
    %v436 = vshrl.u32 %v434, 16
    %v437 = vand.u32 %v433, 65535
    %v438 = vshrl.u32 %v433, 16
    %v439 = vmul.u32 %v435, %v437
    %v440 = vmul.u32 %v435, %v438
    %v441 = vmul.u32 %v436, %v437
    %v442 = vmul.u32 %v436, %v438
    %v443 = vshll.u32 %v440, 16
    %v444 = vshrl.u32 %v440, 16
    %v445 = vshll.u32 %v441, 16
    %v446 = vshrl.u32 %v441, 16
    %vm447 = vc.u32 %v439, %v443
    %v448 = vsel %vm447, 1, 0
    %v449 = vadd.s32 %v439, %v443
    %v450 = vadd.s32 %v442, %v448
    %vm451 = vc.u32 %v449, %v445
    %v452 = vsel %vm451, 1, 0
    %v453 = vadd.s32 %v449, %v445
    %v454 = vadd.s32 %v450, %v452
    %v455 = vadd.s32 %v454, %v444
    %v456 = vadd.s32 %v455, %v446
    %v457 = vand.u32 %v434, 65535
    %v458 = vshrl.u32 %v434, 16
    %v459 = vand.u32 %v429, 65535
    %v460 = vshrl.u32 %v429, 16
    %v461 = vmul.u32 %v457, %v459
    %v462 = vmul.u32 %v457, %v460
    %v463 = vmul.u32 %v458, %v459
    %v464 = vmul.u32 %v458, %v460
    %v465 = vshll.u32 %v462, 16
    %v466 = vshrl.u32 %v462, 16
    %v467 = vshll.u32 %v463, 16
    %v468 = vshrl.u32 %v463, 16
    %vm469 = vc.u32 %v461, %v465
    %v470 = vsel %vm469, 1, 0
    %v471 = vadd.s32 %v461, %v465
    %v472 = vadd.s32 %v464, %v470
    %vm473 = vc.u32 %v471, %v467
    %v474 = vsel %vm473, 1, 0
    %v475 = vadd.s32 %v471, %v467
    %v476 = vadd.s32 %v472, %v474
    %v477 = vadd.s32 %v476, %v466
    %v478 = vadd.s32 %v477, %v468
    %v479 = vmul.u32 %v434, %v425
    %v480 = vadd.s32 %v456, %v475
    %vm481 = vc.u32 %v456, %v475
    %v482 = vadd.s32 %v478, 1
    %v483 = vsel %vm481, %v482, %v478
    %v484 = vadd.s32 %v479, %v483
    %v485 = vadd.s32 %v484, 536870912
    %v486 = vshrl.u32 %v485, 30
    %v487 = vshll.u32 %v486, 30
    %v488 = vsub.s32 %v484, %v487
    %vm489 = vcmp.lt.s32.totalorder %v488, 0
    %v490 = vsub.s32 0, %v488
    %v491 = vsel %vm489, %v490, %v488
    %v492 = vclz %v491
    %v493 = vsub.s32 %v492, 2
    %vm494 = vcmp.gt.s32.totalorder 0, %v493
    %v495 = vsel %vm494, 0, %v493
    %v496 = vsub.s32 32, %v495
    %v497 = vshll.u32 %v488, %v495
    %v498 = vshrl.u32 %v480, %v496
    %v499 = vor.u32 %v497, %v498
    %v500 = vsub.s32 4294967266, %v495
    %v501 = vadd.s32 %v500, 127
    %v502 = vshll.u32 %v501, 23
    %v503 = vor.u32 4788187, %v502
    %v504 = vand.u32 2147483647, %v503
    %v506 = vcvt.s32.f32 %v499
    %v507 = vmul.f32 %v506, %v504
    %v508 = vxor.u32 %v507, 2147483648
    %v509 = vsel %vm388, %v508, %v507
    %v510 = vsub.s32 4, %v486
    %v511 = vsel %vm388, %v510, %v486
    %v512 = vsel %vm387, %v70, %v509
    %v513 = vsel %vm387, 0, %v511
    %v514 = vmul.f32 %v512, %v512
    %v515 = vmul.f32 %v514, -0.001358992
    %v516 = vadd.f32 %v515, 0.041655596
    %v517 = vmul.f32 %v514, %v516
    %v518 = vadd.f32 %v517, -0.4999988
    %v519 = vmul.f32 %v514, %v518
    %v520 = vadd.f32 1.0, %v519
    %v521 = vmul.f32 %v512, %v512
    %v522 = vmul.f32 %v521, -0.00019511016
    %v523 = vadd.f32 %v522, 0.008332121
    %v524 = vmul.f32 %v521, %v523
    %v525 = vadd.f32 %v524, -0.16666654
    %v526 = vmul.f32 %v521, %v525
    %v527 = vadd.f32 %v526, 1.0
    %v528 = vmul.f32 %v527, %v512
    %vm529 = vweird.f32 %v70
    %v530 = vadd.s32 %v513, 3
    %v531 = vand.u32 %v530, 3
    %vm532 = vcmp.lt.s32.totalorder %v531, 2
    %vm533 = vcmp.eq.s32.totalorder %v531, 0
    %v534 = vxor.u32 %v528, 2147483648
    %v535 = vsel %vm533, %v520, %v534
    %vm536 = vcmp.eq.s32.totalorder %v531, 2
    %v537 = vxor.u32 %v520, 2147483648
    %v538 = vsel %vm536, %v537, %v528
    %v539 = vsel %vm532, %v535, %v538
    %v540 = vsel %vm529, nan, %v539
    %v541 = vand.u32 2147483647, %v71
    %vm542 = vcmp.le.f32.partialorder %v541, 0.7853982
    %vm543 = vcmp.lt.s32.totalorder %v71, 0
    %v544 = vand.u32 %v71, 2139095040
    %v545 = vshrl.u32 %v544, 23
    %v546 = vsub.s32 %v545, 127
    %v547 = vand.u32 2147483647, %v71
    %v548 = vand.u32 %v547, 8388607
    %v549 = vor.u32 %v548, 8388608
    %v550 = vsub.s32 0, %v549
    %v551 = vadd.s32 %v546, 1
    %vm552 = vcmp.gt.s32.totalorder %v551, 0
    %v553 = vsel %vm552, %v551, 0
    %v554 = vshrl.u32 %v553, 5
    %v555 = vand.u32 %v553, 31
    %v556 = vsub.s32 32, %v555
    %v557 = vshrl.u32 683565275, %v556
    %v558 = vshll.u32 683565275, %v555
    %v559 = vshrl.u32 2475754826, %v556
    %v560 = vor.u32 %v558, %v559
    %v561 = vshll.u32 2475754826, %v555
    %v562 = vshrl.u32 2131351028, %v556
    %v563 = vor.u32 %v561, %v562
    %v564 = vshll.u32 2131351028, %v555
    %v565 = vshrl.u32 2102212464, %v556
    %v566 = vor.u32 %v564, %v565
    %v567 = vshll.u32 2102212464, %v555
    %v568 = vshrl.u32 920167782, %v556
    %v569 = vor.u32 %v567, %v568
    %v570 = vshll.u32 920167782, %v555
    %v571 = vshrl.u32 1326507024, %v556
    %v572 = vor.u32 %v570, %v571
    %vm573 = vcmp.lt.s32.totalorder %v554, 1
    %vm574 = vcmp.lt.s32.totalorder %v554, 2
    %vm575 = vcmp.lt.s32.totalorder %v554, 3
    %vm576 = vcmp.lt.s32.totalorder %v554, 4
    %v577 = vsel %vm573, %v557, %v560
    %v578 = vsel %vm576, %v566, 2102212464
    %v579 = vsel %vm575, %v563, %v578
    %v580 = vsel %vm574, %v577, %v579
    %v581 = vsel %vm573, %v560, %v563
    %v582 = vsel %vm576, %v569, 920167782
    %v583 = vsel %vm575, %v566, %v582
    %v584 = vsel %vm574, %v581, %v583
    %v585 = vsel %vm573, %v563, %v566
    %v586 = vsel %vm576, %v572, 1326507024
    %v587 = vsel %vm575, %v569, %v586
    %v588 = vsel %vm574, %v585, %v587
    %v589 = vshll.u32 %v549, 8
    %v590 = vand.u32 %v589, 65535
    %v591 = vshrl.u32 %v589, 16
    %v592 = vand.u32 %v588, 65535
    %v593 = vshrl.u32 %v588, 16
    %v594 = vmul.u32 %v590, %v592
    %v595 = vmul.u32 %v590, %v593
    %v596 = vmul.u32 %v591, %v592
    %v597 = vmul.u32 %v591, %v593
    %v598 = vshll.u32 %v595, 16
    %v599 = vshrl.u32 %v595, 16
    %v600 = vshll.u32 %v596, 16
    %v601 = vshrl.u32 %v596, 16
    %vm602 = vc.u32 %v594, %v598
    %v603 = vsel %vm602, 1, 0
    %v604 = vadd.s32 %v594, %v598
    %v605 = vadd.s32 %v597, %v603
    %vm606 = vc.u32 %v604, %v600
    %v607 = vsel %vm606, 1, 0
    %v608 = vadd.s32 %v604, %v600
    %v609 = vadd.s32 %v605, %v607
    %v610 = vadd.s32 %v609, %v599
    %v611 = vadd.s32 %v610, %v601
    %v612 = vand.u32 %v589, 65535
    %v613 = vshrl.u32 %v589, 16
    %v614 = vand.u32 %v584, 65535
    %v615 = vshrl.u32 %v584, 16
    %v616 = vmul.u32 %v612, %v614
    %v617 = vmul.u32 %v612, %v615
    %v618 = vmul.u32 %v613, %v614
    %v619 = vmul.u32 %v613, %v615
    %v620 = vshll.u32 %v617, 16
    %v621 = vshrl.u32 %v617, 16
    %v622 = vshll.u32 %v618, 16
    %v623 = vshrl.u32 %v618, 16
    %vm624 = vc.u32 %v616, %v620
    %v625 = vsel %vm624, 1, 0
    %v626 = vadd.s32 %v616, %v620
    %v627 = vadd.s32 %v619, %v625
    %vm628 = vc.u32 %v626, %v622
    %v629 = vsel %vm628, 1, 0
    %v630 = vadd.s32 %v626, %v622
    %v631 = vadd.s32 %v627, %v629
    %v632 = vadd.s32 %v631, %v621
    %v633 = vadd.s32 %v632, %v623
    %v634 = vmul.u32 %v589, %v580
    %v635 = vadd.s32 %v611, %v630
    %vm636 = vc.u32 %v611, %v630
    %v637 = vadd.s32 %v633, 1
    %v638 = vsel %vm636, %v637, %v633
    %v639 = vadd.s32 %v634, %v638
    %v640 = vadd.s32 %v639, 536870912
    %v641 = vshrl.u32 %v640, 30
    %v642 = vshll.u32 %v641, 30
    %v643 = vsub.s32 %v639, %v642
    %vm644 = vcmp.lt.s32.totalorder %v643, 0
    %v645 = vsub.s32 0, %v643
    %v646 = vsel %vm644, %v645, %v643
    %v647 = vclz %v646
    %v648 = vsub.s32 %v647, 2
    %vm649 = vcmp.gt.s32.totalorder 0, %v648
    %v650 = vsel %vm649, 0, %v648
    %v651 = vsub.s32 32, %v650
    %v652 = vshll.u32 %v643, %v650
    %v653 = vshrl.u32 %v635, %v651
    %v654 = vor.u32 %v652, %v653
    %v655 = vsub.s32 4294967266, %v650
    %v656 = vadd.s32 %v655, 127
    %v657 = vshll.u32 %v656, 23
    %v658 = vor.u32 4788187, %v657
    %v659 = vand.u32 2147483647, %v658
    %v661 = vcvt.s32.f32 %v654
    %v662 = vmul.f32 %v661, %v659
    %v663 = vxor.u32 %v662, 2147483648
    %v664 = vsel %vm543, %v663, %v662
    %v665 = vsub.s32 4, %v641
    %v666 = vsel %vm543, %v665, %v641
    %v667 = vsel %vm542, %v71, %v664
    %v668 = vsel %vm542, 0, %v666
    %v669 = vmul.f32 %v667, %v667
    %v670 = vmul.f32 %v669, -0.001358992
    %v671 = vadd.f32 %v670, 0.041655596
    %v672 = vmul.f32 %v669, %v671
    %v673 = vadd.f32 %v672, -0.4999988
    %v674 = vmul.f32 %v669, %v673
    %v675 = vadd.f32 1.0, %v674
    %v676 = vmul.f32 %v667, %v667
    %v677 = vmul.f32 %v676, -0.00019511016
    %v678 = vadd.f32 %v677, 0.008332121
    %v679 = vmul.f32 %v676, %v678
    %v680 = vadd.f32 %v679, -0.16666654
    %v681 = vmul.f32 %v676, %v680
    %v682 = vadd.f32 %v681, 1.0
    %v683 = vmul.f32 %v682, %v667
    %vm684 = vweird.f32 %v71
    %v685 = vadd.s32 %v668, 3
    %v686 = vand.u32 %v685, 3
    %vm687 = vcmp.lt.s32.totalorder %v686, 2
    %vm688 = vcmp.eq.s32.totalorder %v686, 0
    %v689 = vxor.u32 %v683, 2147483648
    %v690 = vsel %vm688, %v675, %v689
    %vm691 = vcmp.eq.s32.totalorder %v686, 2
    %v692 = vxor.u32 %v675, 2147483648
    %v693 = vsel %vm691, %v692, %v683
    %v694 = vsel %vm687, %v690, %v693
    %v695 = vsel %vm684, nan, %v694
    %v696 = vand.u32 2147483647, %v72
    %vm697 = vcmp.le.f32.partialorder %v696, 0.7853982
    %vm698 = vcmp.lt.s32.totalorder %v72, 0
    %v699 = vand.u32 %v72, 2139095040
    %v700 = vshrl.u32 %v699, 23
    %v701 = vsub.s32 %v700, 127
    %v702 = vand.u32 2147483647, %v72
    %v703 = vand.u32 %v702, 8388607
    %v704 = vor.u32 %v703, 8388608
    %v705 = vsub.s32 0, %v704
    %v706 = vadd.s32 %v701, 1
    %vm707 = vcmp.gt.s32.totalorder %v706, 0
    %v708 = vsel %vm707, %v706, 0
    %v709 = vshrl.u32 %v708, 5
    %v710 = vand.u32 %v708, 31
    %v711 = vsub.s32 32, %v710
    %v712 = vshrl.u32 683565275, %v711
    %v713 = vshll.u32 683565275, %v710
    %v714 = vshrl.u32 2475754826, %v711
    %v715 = vor.u32 %v713, %v714
    %v716 = vshll.u32 2475754826, %v710
    %v717 = vshrl.u32 2131351028, %v711
    %v718 = vor.u32 %v716, %v717
    %v719 = vshll.u32 2131351028, %v710
    %v720 = vshrl.u32 2102212464, %v711
    %v721 = vor.u32 %v719, %v720
    %v722 = vshll.u32 2102212464, %v710
    %v723 = vshrl.u32 920167782, %v711
    %v724 = vor.u32 %v722, %v723
    %v725 = vshll.u32 920167782, %v710
    %v726 = vshrl.u32 1326507024, %v711
    %v727 = vor.u32 %v725, %v726
    %vm728 = vcmp.lt.s32.totalorder %v709, 1
    %vm729 = vcmp.lt.s32.totalorder %v709, 2
    %vm730 = vcmp.lt.s32.totalorder %v709, 3
    %vm731 = vcmp.lt.s32.totalorder %v709, 4
    %v732 = vsel %vm728, %v712, %v715
    %v733 = vsel %vm731, %v721, 2102212464
    %v734 = vsel %vm730, %v718, %v733
    %v735 = vsel %vm729, %v732, %v734
    %v736 = vsel %vm728, %v715, %v718
    %v737 = vsel %vm731, %v724, 920167782
    %v738 = vsel %vm730, %v721, %v737
    %v739 = vsel %vm729, %v736, %v738
    %v740 = vsel %vm728, %v718, %v721
    %v741 = vsel %vm731, %v727, 1326507024
    %v742 = vsel %vm730, %v724, %v741
    %v743 = vsel %vm729, %v740, %v742
    %v744 = vshll.u32 %v704, 8
    %v745 = vand.u32 %v744, 65535
    %v746 = vshrl.u32 %v744, 16
    %v747 = vand.u32 %v743, 65535
    %v748 = vshrl.u32 %v743, 16
    %v749 = vmul.u32 %v745, %v747
    %v750 = vmul.u32 %v745, %v748
    %v751 = vmul.u32 %v746, %v747
    %v752 = vmul.u32 %v746, %v748
    %v753 = vshll.u32 %v750, 16
    %v754 = vshrl.u32 %v750, 16
    %v755 = vshll.u32 %v751, 16
    %v756 = vshrl.u32 %v751, 16
    %vm757 = vc.u32 %v749, %v753
    %v758 = vsel %vm757, 1, 0
    %v759 = vadd.s32 %v749, %v753
    %v760 = vadd.s32 %v752, %v758
    %vm761 = vc.u32 %v759, %v755
    %v762 = vsel %vm761, 1, 0
    %v763 = vadd.s32 %v759, %v755
    %v764 = vadd.s32 %v760, %v762
    %v765 = vadd.s32 %v764, %v754
    %v766 = vadd.s32 %v765, %v756
    %v767 = vand.u32 %v744, 65535
    %v768 = vshrl.u32 %v744, 16
    %v769 = vand.u32 %v739, 65535
    %v770 = vshrl.u32 %v739, 16
    %v771 = vmul.u32 %v767, %v769
    %v772 = vmul.u32 %v767, %v770
    %v773 = vmul.u32 %v768, %v769
    %v774 = vmul.u32 %v768, %v770
    %v775 = vshll.u32 %v772, 16
    %v776 = vshrl.u32 %v772, 16
    %v777 = vshll.u32 %v773, 16
    %v778 = vshrl.u32 %v773, 16
    %vm779 = vc.u32 %v771, %v775
    %v780 = vsel %vm779, 1, 0
    %v781 = vadd.s32 %v771, %v775
    %v782 = vadd.s32 %v774, %v780
    %vm783 = vc.u32 %v781, %v777
    %v784 = vsel %vm783, 1, 0
    %v785 = vadd.s32 %v781, %v777
    %v786 = vadd.s32 %v782, %v784
    %v787 = vadd.s32 %v786, %v776
    %v788 = vadd.s32 %v787, %v778
    %v789 = vmul.u32 %v744, %v735
    %v790 = vadd.s32 %v766, %v785
    %vm791 = vc.u32 %v766, %v785
    %v792 = vadd.s32 %v788, 1
    %v793 = vsel %vm791, %v792, %v788
    %v794 = vadd.s32 %v789, %v793
    %v795 = vadd.s32 %v794, 536870912
    %v796 = vshrl.u32 %v795, 30
    %v797 = vshll.u32 %v796, 30
    %v798 = vsub.s32 %v794, %v797
    %vm799 = vcmp.lt.s32.totalorder %v798, 0
    %v800 = vsub.s32 0, %v798
    %v801 = vsel %vm799, %v800, %v798
    %v802 = vclz %v801
    %v803 = vsub.s32 %v802, 2
    %vm804 = vcmp.gt.s32.totalorder 0, %v803
    %v805 = vsel %vm804, 0, %v803
    %v806 = vsub.s32 32, %v805
    %v807 = vshll.u32 %v798, %v805
    %v808 = vshrl.u32 %v790, %v806
    %v809 = vor.u32 %v807, %v808
    %v810 = vsub.s32 4294967266, %v805
    %v811 = vadd.s32 %v810, 127
    %v812 = vshll.u32 %v811, 23
    %v813 = vor.u32 4788187, %v812
    %v814 = vand.u32 2147483647, %v813
    %v816 = vcvt.s32.f32 %v809
    %v817 = vmul.f32 %v816, %v814
    %v818 = vxor.u32 %v817, 2147483648
    %v819 = vsel %vm698, %v818, %v817
    %v820 = vsub.s32 4, %v796
    %v821 = vsel %vm698, %v820, %v796
    %v822 = vsel %vm697, %v72, %v819
    %v823 = vsel %vm697, 0, %v821
    %v824 = vmul.f32 %v822, %v822
    %v825 = vmul.f32 %v824, -0.001358992
    %v826 = vadd.f32 %v825, 0.041655596
    %v827 = vmul.f32 %v824, %v826
    %v828 = vadd.f32 %v827, -0.4999988
    %v829 = vmul.f32 %v824, %v828
    %v830 = vadd.f32 1.0, %v829
    %v831 = vmul.f32 %v822, %v822
    %v832 = vmul.f32 %v831, -0.00019511016
    %v833 = vadd.f32 %v832, 0.008332121
    %v834 = vmul.f32 %v831, %v833
    %v835 = vadd.f32 %v834, -0.16666654
    %v836 = vmul.f32 %v831, %v835
    %v837 = vadd.f32 %v836, 1.0
    %v838 = vmul.f32 %v837, %v822
    %vm839 = vweird.f32 %v72
    %v840 = vadd.s32 %v823, 3
    %v841 = vand.u32 %v840, 3
    %vm842 = vcmp.lt.s32.totalorder %v841, 2
    %vm843 = vcmp.eq.s32.totalorder %v841, 0
    %v844 = vxor.u32 %v838, 2147483648
    %v845 = vsel %vm843, %v830, %v844
    %vm846 = vcmp.eq.s32.totalorder %v841, 2
    %v847 = vxor.u32 %v830, 2147483648
    %v848 = vsel %vm846, %v847, %v838
    %v849 = vsel %vm842, %v845, %v848
    %v850 = vsel %vm839, nan, %v849
    %v851 = vand.u32 2147483647, %v73
    %vm852 = vcmp.le.f32.partialorder %v851, 0.7853982
    %vm853 = vcmp.lt.s32.totalorder %v73, 0
    %v854 = vand.u32 %v73, 2139095040
    %v855 = vshrl.u32 %v854, 23
    %v856 = vsub.s32 %v855, 127
    %v857 = vand.u32 2147483647, %v73
    %v858 = vand.u32 %v857, 8388607
    %v859 = vor.u32 %v858, 8388608
    %v860 = vsub.s32 0, %v859
    %v861 = vadd.s32 %v856, 1
    %vm862 = vcmp.gt.s32.totalorder %v861, 0
    %v863 = vsel %vm862, %v861, 0
    %v864 = vshrl.u32 %v863, 5
    %v865 = vand.u32 %v863, 31
    %v866 = vsub.s32 32, %v865
    %v867 = vshrl.u32 683565275, %v866
    %v868 = vshll.u32 683565275, %v865
    %v869 = vshrl.u32 2475754826, %v866
    %v870 = vor.u32 %v868, %v869
    %v871 = vshll.u32 2475754826, %v865
    %v872 = vshrl.u32 2131351028, %v866
    %v873 = vor.u32 %v871, %v872
    %v874 = vshll.u32 2131351028, %v865
    %v875 = vshrl.u32 2102212464, %v866
    %v876 = vor.u32 %v874, %v875
    %v877 = vshll.u32 2102212464, %v865
    %v878 = vshrl.u32 920167782, %v866
    %v879 = vor.u32 %v877, %v878
    %v880 = vshll.u32 920167782, %v865
    %v881 = vshrl.u32 1326507024, %v866
    %v882 = vor.u32 %v880, %v881
    %vm883 = vcmp.lt.s32.totalorder %v864, 1
    %vm884 = vcmp.lt.s32.totalorder %v864, 2
    %vm885 = vcmp.lt.s32.totalorder %v864, 3
    %vm886 = vcmp.lt.s32.totalorder %v864, 4
    %v887 = vsel %vm883, %v867, %v870
    %v888 = vsel %vm886, %v876, 2102212464
    %v889 = vsel %vm885, %v873, %v888
    %v890 = vsel %vm884, %v887, %v889
    %v891 = vsel %vm883, %v870, %v873
    %v892 = vsel %vm886, %v879, 920167782
    %v893 = vsel %vm885, %v876, %v892
    %v894 = vsel %vm884, %v891, %v893
    %v895 = vsel %vm883, %v873, %v876
    %v896 = vsel %vm886, %v882, 1326507024
    %v897 = vsel %vm885, %v879, %v896
    %v898 = vsel %vm884, %v895, %v897
    %v899 = vshll.u32 %v859, 8
    %v900 = vand.u32 %v899, 65535
    %v901 = vshrl.u32 %v899, 16
    %v902 = vand.u32 %v898, 65535
    %v903 = vshrl.u32 %v898, 16
    %v904 = vmul.u32 %v900, %v902
    %v905 = vmul.u32 %v900, %v903
    %v906 = vmul.u32 %v901, %v902
    %v907 = vmul.u32 %v901, %v903
    %v908 = vshll.u32 %v905, 16
    %v909 = vshrl.u32 %v905, 16
    %v910 = vshll.u32 %v906, 16
    %v911 = vshrl.u32 %v906, 16
    %vm912 = vc.u32 %v904, %v908
    %v913 = vsel %vm912, 1, 0
    %v914 = vadd.s32 %v904, %v908
    %v915 = vadd.s32 %v907, %v913
    %vm916 = vc.u32 %v914, %v910
    %v917 = vsel %vm916, 1, 0
    %v918 = vadd.s32 %v914, %v910
    %v919 = vadd.s32 %v915, %v917
    %v920 = vadd.s32 %v919, %v909
    %v921 = vadd.s32 %v920, %v911
    %v922 = vand.u32 %v899, 65535
    %v923 = vshrl.u32 %v899, 16
    %v924 = vand.u32 %v894, 65535
    %v925 = vshrl.u32 %v894, 16
    %v926 = vmul.u32 %v922, %v924
    %v927 = vmul.u32 %v922, %v925
    %v928 = vmul.u32 %v923, %v924
    %v929 = vmul.u32 %v923, %v925
    %v930 = vshll.u32 %v927, 16
    %v931 = vshrl.u32 %v927, 16
    %v932 = vshll.u32 %v928, 16
    %v933 = vshrl.u32 %v928, 16
    %vm934 = vc.u32 %v926, %v930
    %v935 = vsel %vm934, 1, 0
    %v936 = vadd.s32 %v926, %v930
    %v937 = vadd.s32 %v929, %v935
    %vm938 = vc.u32 %v936, %v932
    %v939 = vsel %vm938, 1, 0
    %v940 = vadd.s32 %v936, %v932
    %v941 = vadd.s32 %v937, %v939
    %v942 = vadd.s32 %v941, %v931
    %v943 = vadd.s32 %v942, %v933
    %v944 = vmul.u32 %v899, %v890
    %v945 = vadd.s32 %v921, %v940
    %vm946 = vc.u32 %v921, %v940
    %v947 = vadd.s32 %v943, 1
    %v948 = vsel %vm946, %v947, %v943
    %v949 = vadd.s32 %v944, %v948
    %v950 = vadd.s32 %v949, 536870912
    %v951 = vshrl.u32 %v950, 30
    %v952 = vshll.u32 %v951, 30
    %v953 = vsub.s32 %v949, %v952
    %vm954 = vcmp.lt.s32.totalorder %v953, 0
    %v955 = vsub.s32 0, %v953
    %v956 = vsel %vm954, %v955, %v953
    %v957 = vclz %v956
    %v958 = vsub.s32 %v957, 2
    %vm959 = vcmp.gt.s32.totalorder 0, %v958
    %v960 = vsel %vm959, 0, %v958
    %v961 = vsub.s32 32, %v960
    %v962 = vshll.u32 %v953, %v960
    %v963 = vshrl.u32 %v945, %v961
    %v964 = vor.u32 %v962, %v963
    %v965 = vsub.s32 4294967266, %v960
    %v966 = vadd.s32 %v965, 127
    %v967 = vshll.u32 %v966, 23
    %v968 = vor.u32 4788187, %v967
    %v969 = vand.u32 2147483647, %v968
    %v971 = vcvt.s32.f32 %v964
    %v972 = vmul.f32 %v971, %v969
    %v973 = vxor.u32 %v972, 2147483648
    %v974 = vsel %vm853, %v973, %v972
    %v975 = vsub.s32 4, %v951
    %v976 = vsel %vm853, %v975, %v951
    %v977 = vsel %vm852, %v73, %v974
    %v978 = vsel %vm852, 0, %v976
    %v979 = vmul.f32 %v977, %v977
    %v980 = vmul.f32 %v979, -0.001358992
    %v981 = vadd.f32 %v980, 0.041655596
    %v982 = vmul.f32 %v979, %v981
    %v983 = vadd.f32 %v982, -0.4999988
    %v984 = vmul.f32 %v979, %v983
    %v985 = vadd.f32 1.0, %v984
    %v986 = vmul.f32 %v977, %v977
    %v987 = vmul.f32 %v986, -0.00019511016
    %v988 = vadd.f32 %v987, 0.008332121
    %v989 = vmul.f32 %v986, %v988
    %v990 = vadd.f32 %v989, -0.16666654
    %v991 = vmul.f32 %v986, %v990
    %v992 = vadd.f32 %v991, 1.0
    %v993 = vmul.f32 %v992, %v977
    %vm994 = vweird.f32 %v73
    %v995 = vadd.s32 %v978, 3
    %v996 = vand.u32 %v995, 3
    %vm997 = vcmp.lt.s32.totalorder %v996, 2
    %vm998 = vcmp.eq.s32.totalorder %v996, 0
    %v999 = vxor.u32 %v993, 2147483648
    %v1000 = vsel %vm998, %v985, %v999
    %vm1001 = vcmp.eq.s32.totalorder %v996, 2
    %v1002 = vxor.u32 %v985, 2147483648
    %v1003 = vsel %vm1001, %v1002, %v993
    %v1004 = vsel %vm997, %v1000, %v1003
    %v1005 = vsel %vm994, nan, %v1004
    %v1006 = vand.u32 2147483647, %v74
    %vm1007 = vcmp.le.f32.partialorder %v1006, 0.7853982
    %vm1008 = vcmp.lt.s32.totalorder %v74, 0
    %v1009 = vand.u32 %v74, 2139095040
    %v1010 = vshrl.u32 %v1009, 23
    %v1011 = vsub.s32 %v1010, 127
    %v1012 = vand.u32 2147483647, %v74
    %v1013 = vand.u32 %v1012, 8388607
    %v1014 = vor.u32 %v1013, 8388608
    %v1015 = vsub.s32 0, %v1014
    %v1016 = vadd.s32 %v1011, 1
    %vm1017 = vcmp.gt.s32.totalorder %v1016, 0
    %v1018 = vsel %vm1017, %v1016, 0
    %v1019 = vshrl.u32 %v1018, 5
    %v1020 = vand.u32 %v1018, 31
    %v1021 = vsub.s32 32, %v1020
    %v1022 = vshrl.u32 683565275, %v1021
    %v1023 = vshll.u32 683565275, %v1020
    %v1024 = vshrl.u32 2475754826, %v1021
    %v1025 = vor.u32 %v1023, %v1024
    %v1026 = vshll.u32 2475754826, %v1020
    %v1027 = vshrl.u32 2131351028, %v1021
    %v1028 = vor.u32 %v1026, %v1027
    %v1029 = vshll.u32 2131351028, %v1020
    %v1030 = vshrl.u32 2102212464, %v1021
    %v1031 = vor.u32 %v1029, %v1030
    %v1032 = vshll.u32 2102212464, %v1020
    %v1033 = vshrl.u32 920167782, %v1021
    %v1034 = vor.u32 %v1032, %v1033
    %v1035 = vshll.u32 920167782, %v1020
    %v1036 = vshrl.u32 1326507024, %v1021
    %v1037 = vor.u32 %v1035, %v1036
    %vm1038 = vcmp.lt.s32.totalorder %v1019, 1
    %vm1039 = vcmp.lt.s32.totalorder %v1019, 2
    %vm1040 = vcmp.lt.s32.totalorder %v1019, 3
    %vm1041 = vcmp.lt.s32.totalorder %v1019, 4
    %v1042 = vsel %vm1038, %v1022, %v1025
    %v1043 = vsel %vm1041, %v1031, 2102212464
    %v1044 = vsel %vm1040, %v1028, %v1043
    %v1045 = vsel %vm1039, %v1042, %v1044
    %v1046 = vsel %vm1038, %v1025, %v1028
    %v1047 = vsel %vm1041, %v1034, 920167782
    %v1048 = vsel %vm1040, %v1031, %v1047
    %v1049 = vsel %vm1039, %v1046, %v1048
    %v1050 = vsel %vm1038, %v1028, %v1031
    %v1051 = vsel %vm1041, %v1037, 1326507024
    %v1052 = vsel %vm1040, %v1034, %v1051
    %v1053 = vsel %vm1039, %v1050, %v1052
    %v1054 = vshll.u32 %v1014, 8
    %v1055 = vand.u32 %v1054, 65535
    %v1056 = vshrl.u32 %v1054, 16
    %v1057 = vand.u32 %v1053, 65535
    %v1058 = vshrl.u32 %v1053, 16
    %v1059 = vmul.u32 %v1055, %v1057
    %v1060 = vmul.u32 %v1055, %v1058
    %v1061 = vmul.u32 %v1056, %v1057
    %v1062 = vmul.u32 %v1056, %v1058
    %v1063 = vshll.u32 %v1060, 16
    %v1064 = vshrl.u32 %v1060, 16
    %v1065 = vshll.u32 %v1061, 16
    %v1066 = vshrl.u32 %v1061, 16
    %vm1067 = vc.u32 %v1059, %v1063
    %v1068 = vsel %vm1067, 1, 0
    %v1069 = vadd.s32 %v1059, %v1063
    %v1070 = vadd.s32 %v1062, %v1068
    %vm1071 = vc.u32 %v1069, %v1065
    %v1072 = vsel %vm1071, 1, 0
    %v1073 = vadd.s32 %v1069, %v1065
    %v1074 = vadd.s32 %v1070, %v1072
    %v1075 = vadd.s32 %v1074, %v1064
    %v1076 = vadd.s32 %v1075, %v1066
    %v1077 = vand.u32 %v1054, 65535
    %v1078 = vshrl.u32 %v1054, 16
    %v1079 = vand.u32 %v1049, 65535
    %v1080 = vshrl.u32 %v1049, 16
    %v1081 = vmul.u32 %v1077, %v1079
    %v1082 = vmul.u32 %v1077, %v1080
    %v1083 = vmul.u32 %v1078, %v1079
    %v1084 = vmul.u32 %v1078, %v1080
    %v1085 = vshll.u32 %v1082, 16
    %v1086 = vshrl.u32 %v1082, 16
    %v1087 = vshll.u32 %v1083, 16
    %v1088 = vshrl.u32 %v1083, 16
    %vm1089 = vc.u32 %v1081, %v1085
    %v1090 = vsel %vm1089, 1, 0
    %v1091 = vadd.s32 %v1081, %v1085
    %v1092 = vadd.s32 %v1084, %v1090
    %vm1093 = vc.u32 %v1091, %v1087
    %v1094 = vsel %vm1093, 1, 0
    %v1095 = vadd.s32 %v1091, %v1087
    %v1096 = vadd.s32 %v1092, %v1094
    %v1097 = vadd.s32 %v1096, %v1086
    %v1098 = vadd.s32 %v1097, %v1088
    %v1099 = vmul.u32 %v1054, %v1045
    %v1100 = vadd.s32 %v1076, %v1095
    %vm1101 = vc.u32 %v1076, %v1095
    %v1102 = vadd.s32 %v1098, 1
    %v1103 = vsel %vm1101, %v1102, %v1098
    %v1104 = vadd.s32 %v1099, %v1103
    %v1105 = vadd.s32 %v1104, 536870912
    %v1106 = vshrl.u32 %v1105, 30
    %v1107 = vshll.u32 %v1106, 30
    %v1108 = vsub.s32 %v1104, %v1107
    %vm1109 = vcmp.lt.s32.totalorder %v1108, 0
    %v1110 = vsub.s32 0, %v1108
    %v1111 = vsel %vm1109, %v1110, %v1108
    %v1112 = vclz %v1111
    %v1113 = vsub.s32 %v1112, 2
    %vm1114 = vcmp.gt.s32.totalorder 0, %v1113
    %v1115 = vsel %vm1114, 0, %v1113
    %v1116 = vsub.s32 32, %v1115
    %v1117 = vshll.u32 %v1108, %v1115
    %v1118 = vshrl.u32 %v1100, %v1116
    %v1119 = vor.u32 %v1117, %v1118
    %v1120 = vsub.s32 4294967266, %v1115
    %v1121 = vadd.s32 %v1120, 127
    %v1122 = vshll.u32 %v1121, 23
    %v1123 = vor.u32 4788187, %v1122
    %v1124 = vand.u32 2147483647, %v1123
    %v1126 = vcvt.s32.f32 %v1119
    %v1127 = vmul.f32 %v1126, %v1124
    %v1128 = vxor.u32 %v1127, 2147483648
    %v1129 = vsel %vm1008, %v1128, %v1127
    %v1130 = vsub.s32 4, %v1106
    %v1131 = vsel %vm1008, %v1130, %v1106
    %v1132 = vsel %vm1007, %v74, %v1129
    %v1133 = vsel %vm1007, 0, %v1131
    %v1134 = vmul.f32 %v1132, %v1132
    %v1135 = vmul.f32 %v1134, -0.001358992
    %v1136 = vadd.f32 %v1135, 0.041655596
    %v1137 = vmul.f32 %v1134, %v1136
    %v1138 = vadd.f32 %v1137, -0.4999988
    %v1139 = vmul.f32 %v1134, %v1138
    %v1140 = vadd.f32 1.0, %v1139
    %v1141 = vmul.f32 %v1132, %v1132
    %v1142 = vmul.f32 %v1141, -0.00019511016
    %v1143 = vadd.f32 %v1142, 0.008332121
    %v1144 = vmul.f32 %v1141, %v1143
    %v1145 = vadd.f32 %v1144, -0.16666654
    %v1146 = vmul.f32 %v1141, %v1145
    %v1147 = vadd.f32 %v1146, 1.0
    %v1148 = vmul.f32 %v1147, %v1132
    %vm1149 = vweird.f32 %v74
    %v1150 = vadd.s32 %v1133, 3
    %v1151 = vand.u32 %v1150, 3
    %vm1152 = vcmp.lt.s32.totalorder %v1151, 2
    %vm1153 = vcmp.eq.s32.totalorder %v1151, 0
    %v1154 = vxor.u32 %v1148, 2147483648
    %v1155 = vsel %vm1153, %v1140, %v1154
    %vm1156 = vcmp.eq.s32.totalorder %v1151, 2
    %v1157 = vxor.u32 %v1140, 2147483648
    %v1158 = vsel %vm1156, %v1157, %v1148
    %v1159 = vsel %vm1152, %v1155, %v1158
    %v1160 = vsel %vm1149, nan, %v1159
    %v1161 = vand.u32 2147483647, %v75
    %vm1162 = vcmp.le.f32.partialorder %v1161, 0.7853982
    %vm1163 = vcmp.lt.s32.totalorder %v75, 0
    %v1164 = vand.u32 %v75, 2139095040
    %v1165 = vshrl.u32 %v1164, 23
    %v1166 = vsub.s32 %v1165, 127
    %v1167 = vand.u32 2147483647, %v75
    %v1168 = vand.u32 %v1167, 8388607
    %v1169 = vor.u32 %v1168, 8388608
    %v1170 = vsub.s32 0, %v1169
    %v1171 = vadd.s32 %v1166, 1
    %vm1172 = vcmp.gt.s32.totalorder %v1171, 0
    %v1173 = vsel %vm1172, %v1171, 0
    %v1174 = vshrl.u32 %v1173, 5
    %v1175 = vand.u32 %v1173, 31
    %v1176 = vsub.s32 32, %v1175
    %v1177 = vshrl.u32 683565275, %v1176
    %v1178 = vshll.u32 683565275, %v1175
    %v1179 = vshrl.u32 2475754826, %v1176
    %v1180 = vor.u32 %v1178, %v1179
    %v1181 = vshll.u32 2475754826, %v1175
    %v1182 = vshrl.u32 2131351028, %v1176
    %v1183 = vor.u32 %v1181, %v1182
    %v1184 = vshll.u32 2131351028, %v1175
    %v1185 = vshrl.u32 2102212464, %v1176
    %v1186 = vor.u32 %v1184, %v1185
    %v1187 = vshll.u32 2102212464, %v1175
    %v1188 = vshrl.u32 920167782, %v1176
    %v1189 = vor.u32 %v1187, %v1188
    %v1190 = vshll.u32 920167782, %v1175
    %v1191 = vshrl.u32 1326507024, %v1176
    %v1192 = vor.u32 %v1190, %v1191
    %vm1193 = vcmp.lt.s32.totalorder %v1174, 1
    %vm1194 = vcmp.lt.s32.totalorder %v1174, 2
    %vm1195 = vcmp.lt.s32.totalorder %v1174, 3
    %vm1196 = vcmp.lt.s32.totalorder %v1174, 4
    %v1197 = vsel %vm1193, %v1177, %v1180
    %v1198 = vsel %vm1196, %v1186, 2102212464
    %v1199 = vsel %vm1195, %v1183, %v1198
    %v1200 = vsel %vm1194, %v1197, %v1199
    %v1201 = vsel %vm1193, %v1180, %v1183
    %v1202 = vsel %vm1196, %v1189, 920167782
    %v1203 = vsel %vm1195, %v1186, %v1202
    %v1204 = vsel %vm1194, %v1201, %v1203
    %v1205 = vsel %vm1193, %v1183, %v1186
    %v1206 = vsel %vm1196, %v1192, 1326507024
    %v1207 = vsel %vm1195, %v1189, %v1206
    %v1208 = vsel %vm1194, %v1205, %v1207
    %v1209 = vshll.u32 %v1169, 8
    %v1210 = vand.u32 %v1209, 65535
    %v1211 = vshrl.u32 %v1209, 16
    %v1212 = vand.u32 %v1208, 65535
    %v1213 = vshrl.u32 %v1208, 16
    %v1214 = vmul.u32 %v1210, %v1212
    %v1215 = vmul.u32 %v1210, %v1213
    %v1216 = vmul.u32 %v1211, %v1212
    %v1217 = vmul.u32 %v1211, %v1213
    %v1218 = vshll.u32 %v1215, 16
    %v1219 = vshrl.u32 %v1215, 16
    %v1220 = vshll.u32 %v1216, 16
    %v1221 = vshrl.u32 %v1216, 16
    %vm1222 = vc.u32 %v1214, %v1218
    %v1223 = vsel %vm1222, 1, 0
    %v1224 = vadd.s32 %v1214, %v1218
    %v1225 = vadd.s32 %v1217, %v1223
    %vm1226 = vc.u32 %v1224, %v1220
    %v1227 = vsel %vm1226, 1, 0
    %v1228 = vadd.s32 %v1224, %v1220
    %v1229 = vadd.s32 %v1225, %v1227
    %v1230 = vadd.s32 %v1229, %v1219
    %v1231 = vadd.s32 %v1230, %v1221
    %v1232 = vand.u32 %v1209, 65535
    %v1233 = vshrl.u32 %v1209, 16
    %v1234 = vand.u32 %v1204, 65535
    %v1235 = vshrl.u32 %v1204, 16
    %v1236 = vmul.u32 %v1232, %v1234
    %v1237 = vmul.u32 %v1232, %v1235
    %v1238 = vmul.u32 %v1233, %v1234
    %v1239 = vmul.u32 %v1233, %v1235
    %v1240 = vshll.u32 %v1237, 16
    %v1241 = vshrl.u32 %v1237, 16
    %v1242 = vshll.u32 %v1238, 16
    %v1243 = vshrl.u32 %v1238, 16
    %vm1244 = vc.u32 %v1236, %v1240
    %v1245 = vsel %vm1244, 1, 0
    %v1246 = vadd.s32 %v1236, %v1240
    %v1247 = vadd.s32 %v1239, %v1245
    %vm1248 = vc.u32 %v1246, %v1242
    %v1249 = vsel %vm1248, 1, 0
    %v1250 = vadd.s32 %v1246, %v1242
    %v1251 = vadd.s32 %v1247, %v1249
    %v1252 = vadd.s32 %v1251, %v1241
    %v1253 = vadd.s32 %v1252, %v1243
    %v1254 = vmul.u32 %v1209, %v1200
    %v1255 = vadd.s32 %v1231, %v1250
    %vm1256 = vc.u32 %v1231, %v1250
    %v1257 = vadd.s32 %v1253, 1
    %v1258 = vsel %vm1256, %v1257, %v1253
    %v1259 = vadd.s32 %v1254, %v1258
    %v1260 = vadd.s32 %v1259, 536870912
    %v1261 = vshrl.u32 %v1260, 30
    %v1262 = vshll.u32 %v1261, 30
    %v1263 = vsub.s32 %v1259, %v1262
    %vm1264 = vcmp.lt.s32.totalorder %v1263, 0
    %v1265 = vsub.s32 0, %v1263
    %v1266 = vsel %vm1264, %v1265, %v1263
    %v1267 = vclz %v1266
    %v1268 = vsub.s32 %v1267, 2
    %vm1269 = vcmp.gt.s32.totalorder 0, %v1268
    %v1270 = vsel %vm1269, 0, %v1268
    %v1271 = vsub.s32 32, %v1270
    %v1272 = vshll.u32 %v1263, %v1270
    %v1273 = vshrl.u32 %v1255, %v1271
    %v1274 = vor.u32 %v1272, %v1273
    %v1275 = vsub.s32 4294967266, %v1270
    %v1276 = vadd.s32 %v1275, 127
    %v1277 = vshll.u32 %v1276, 23
    %v1278 = vor.u32 4788187, %v1277
    %v1279 = vand.u32 2147483647, %v1278
    %v1281 = vcvt.s32.f32 %v1274
    %v1282 = vmul.f32 %v1281, %v1279
    %v1283 = vxor.u32 %v1282, 2147483648
    %v1284 = vsel %vm1163, %v1283, %v1282
    %v1285 = vsub.s32 4, %v1261
    %v1286 = vsel %vm1163, %v1285, %v1261
    %v1287 = vsel %vm1162, %v75, %v1284
    %v1288 = vsel %vm1162, 0, %v1286
    %v1289 = vmul.f32 %v1287, %v1287
    %v1290 = vmul.f32 %v1289, -0.001358992
    %v1291 = vadd.f32 %v1290, 0.041655596
    %v1292 = vmul.f32 %v1289, %v1291
    %v1293 = vadd.f32 %v1292, -0.4999988
    %v1294 = vmul.f32 %v1289, %v1293
    %v1295 = vadd.f32 1.0, %v1294
    %v1296 = vmul.f32 %v1287, %v1287
    %v1297 = vmul.f32 %v1296, -0.00019511016
    %v1298 = vadd.f32 %v1297, 0.008332121
    %v1299 = vmul.f32 %v1296, %v1298
    %v1300 = vadd.f32 %v1299, -0.16666654
    %v1301 = vmul.f32 %v1296, %v1300
    %v1302 = vadd.f32 %v1301, 1.0
    %v1303 = vmul.f32 %v1302, %v1287
    %vm1304 = vweird.f32 %v75
    %v1305 = vadd.s32 %v1288, 3
    %v1306 = vand.u32 %v1305, 3
    %vm1307 = vcmp.lt.s32.totalorder %v1306, 2
    %vm1308 = vcmp.eq.s32.totalorder %v1306, 0
    %v1309 = vxor.u32 %v1303, 2147483648
    %v1310 = vsel %vm1308, %v1295, %v1309
    %vm1311 = vcmp.eq.s32.totalorder %v1306, 2
    %v1312 = vxor.u32 %v1295, 2147483648
    %v1313 = vsel %vm1311, %v1312, %v1303
    %v1314 = vsel %vm1307, %v1310, %v1313
    %v1315 = vsel %vm1304, nan, %v1314
    %v1316 = vand.u32 2147483647, %v68
    %vm1317 = vcmp.le.f32.partialorder %v1316, 0.7853982
    %vm1318 = vcmp.lt.s32.totalorder %v68, 0
    %v1319 = vand.u32 %v68, 2139095040
    %v1320 = vshrl.u32 %v1319, 23
    %v1321 = vsub.s32 %v1320, 127
    %v1322 = vand.u32 2147483647, %v68
    %v1323 = vand.u32 %v1322, 8388607
    %v1324 = vor.u32 %v1323, 8388608
    %v1325 = vsub.s32 0, %v1324
    %v1326 = vadd.s32 %v1321, 1
    %vm1327 = vcmp.gt.s32.totalorder %v1326, 0
    %v1328 = vsel %vm1327, %v1326, 0
    %v1329 = vshrl.u32 %v1328, 5
    %v1330 = vand.u32 %v1328, 31
    %v1331 = vsub.s32 32, %v1330
    %v1332 = vshrl.u32 683565275, %v1331
    %v1333 = vshll.u32 683565275, %v1330
    %v1334 = vshrl.u32 2475754826, %v1331
    %v1335 = vor.u32 %v1333, %v1334
    %v1336 = vshll.u32 2475754826, %v1330
    %v1337 = vshrl.u32 2131351028, %v1331
    %v1338 = vor.u32 %v1336, %v1337
    %v1339 = vshll.u32 2131351028, %v1330
    %v1340 = vshrl.u32 2102212464, %v1331
    %v1341 = vor.u32 %v1339, %v1340
    %v1342 = vshll.u32 2102212464, %v1330
    %v1343 = vshrl.u32 920167782, %v1331
    %v1344 = vor.u32 %v1342, %v1343
    %v1345 = vshll.u32 920167782, %v1330
    %v1346 = vshrl.u32 1326507024, %v1331
    %v1347 = vor.u32 %v1345, %v1346
    %vm1348 = vcmp.lt.s32.totalorder %v1329, 1
    %vm1349 = vcmp.lt.s32.totalorder %v1329, 2
    %vm1350 = vcmp.lt.s32.totalorder %v1329, 3
    %vm1351 = vcmp.lt.s32.totalorder %v1329, 4
    %v1352 = vsel %vm1348, %v1332, %v1335
    %v1353 = vsel %vm1351, %v1341, 2102212464
    %v1354 = vsel %vm1350, %v1338, %v1353
    %v1355 = vsel %vm1349, %v1352, %v1354
    %v1356 = vsel %vm1348, %v1335, %v1338
    %v1357 = vsel %vm1351, %v1344, 920167782
    %v1358 = vsel %vm1350, %v1341, %v1357
    %v1359 = vsel %vm1349, %v1356, %v1358
    %v1360 = vsel %vm1348, %v1338, %v1341
    %v1361 = vsel %vm1351, %v1347, 1326507024
    %v1362 = vsel %vm1350, %v1344, %v1361
    %v1363 = vsel %vm1349, %v1360, %v1362
    %v1364 = vshll.u32 %v1324, 8
    %v1365 = vand.u32 %v1364, 65535
    %v1366 = vshrl.u32 %v1364, 16
    %v1367 = vand.u32 %v1363, 65535
    %v1368 = vshrl.u32 %v1363, 16
    %v1369 = vmul.u32 %v1365, %v1367
    %v1370 = vmul.u32 %v1365, %v1368
    %v1371 = vmul.u32 %v1366, %v1367
    %v1372 = vmul.u32 %v1366, %v1368
    %v1373 = vshll.u32 %v1370, 16
    %v1374 = vshrl.u32 %v1370, 16
    %v1375 = vshll.u32 %v1371, 16
    %v1376 = vshrl.u32 %v1371, 16
    %vm1377 = vc.u32 %v1369, %v1373
    %v1378 = vsel %vm1377, 1, 0
    %v1379 = vadd.s32 %v1369, %v1373
    %v1380 = vadd.s32 %v1372, %v1378
    %vm1381 = vc.u32 %v1379, %v1375
    %v1382 = vsel %vm1381, 1, 0
    %v1383 = vadd.s32 %v1379, %v1375
    %v1384 = vadd.s32 %v1380, %v1382
    %v1385 = vadd.s32 %v1384, %v1374
    %v1386 = vadd.s32 %v1385, %v1376
    %v1387 = vand.u32 %v1364, 65535
    %v1388 = vshrl.u32 %v1364, 16
    %v1389 = vand.u32 %v1359, 65535
    %v1390 = vshrl.u32 %v1359, 16
    %v1391 = vmul.u32 %v1387, %v1389
    %v1392 = vmul.u32 %v1387, %v1390
    %v1393 = vmul.u32 %v1388, %v1389
    %v1394 = vmul.u32 %v1388, %v1390
    %v1395 = vshll.u32 %v1392, 16
    %v1396 = vshrl.u32 %v1392, 16
    %v1397 = vshll.u32 %v1393, 16
    %v1398 = vshrl.u32 %v1393, 16
    %vm1399 = vc.u32 %v1391, %v1395
    %v1400 = vsel %vm1399, 1, 0
    %v1401 = vadd.s32 %v1391, %v1395
    %v1402 = vadd.s32 %v1394, %v1400
    %vm1403 = vc.u32 %v1401, %v1397
    %v1404 = vsel %vm1403, 1, 0
    %v1405 = vadd.s32 %v1401, %v1397
    %v1406 = vadd.s32 %v1402, %v1404
    %v1407 = vadd.s32 %v1406, %v1396
    %v1408 = vadd.s32 %v1407, %v1398
    %v1409 = vmul.u32 %v1364, %v1355
    %v1410 = vadd.s32 %v1386, %v1405
    %vm1411 = vc.u32 %v1386, %v1405
    %v1412 = vadd.s32 %v1408, 1
    %v1413 = vsel %vm1411, %v1412, %v1408
    %v1414 = vadd.s32 %v1409, %v1413
    %v1415 = vadd.s32 %v1414, 536870912
    %v1416 = vshrl.u32 %v1415, 30
    %v1417 = vshll.u32 %v1416, 30
    %v1418 = vsub.s32 %v1414, %v1417
    %vm1419 = vcmp.lt.s32.totalorder %v1418, 0
    %v1420 = vsub.s32 0, %v1418
    %v1421 = vsel %vm1419, %v1420, %v1418
    %v1422 = vclz %v1421
    %v1423 = vsub.s32 %v1422, 2
    %vm1424 = vcmp.gt.s32.totalorder 0, %v1423
    %v1425 = vsel %vm1424, 0, %v1423
    %v1426 = vsub.s32 32, %v1425
    %v1427 = vshll.u32 %v1418, %v1425
    %v1428 = vshrl.u32 %v1410, %v1426
    %v1429 = vor.u32 %v1427, %v1428
    %v1430 = vsub.s32 4294967266, %v1425
    %v1431 = vadd.s32 %v1430, 127
    %v1432 = vshll.u32 %v1431, 23
    %v1433 = vor.u32 4788187, %v1432
    %v1434 = vand.u32 2147483647, %v1433
    %v1436 = vcvt.s32.f32 %v1429
    %v1437 = vmul.f32 %v1436, %v1434
    %v1438 = vxor.u32 %v1437, 2147483648
    %v1439 = vsel %vm1318, %v1438, %v1437
    %v1440 = vsub.s32 4, %v1416
    %v1441 = vsel %vm1318, %v1440, %v1416
    %v1442 = vsel %vm1317, %v68, %v1439
    %v1443 = vsel %vm1317, 0, %v1441
    %v1444 = vmul.f32 %v1442, %v1442
    %v1445 = vmul.f32 %v1444, -0.001358992
    %v1446 = vadd.f32 %v1445, 0.041655596
    %v1447 = vmul.f32 %v1444, %v1446
    %v1448 = vadd.f32 %v1447, -0.4999988
    %v1449 = vmul.f32 %v1444, %v1448
    %v1450 = vadd.f32 1.0, %v1449
    %v1451 = vmul.f32 %v1442, %v1442
    %v1452 = vmul.f32 %v1451, -0.00019511016
    %v1453 = vadd.f32 %v1452, 0.008332121
    %v1454 = vmul.f32 %v1451, %v1453
    %v1455 = vadd.f32 %v1454, -0.16666654
    %v1456 = vmul.f32 %v1451, %v1455
    %v1457 = vadd.f32 %v1456, 1.0
    %v1458 = vmul.f32 %v1457, %v1442
    %vm1459 = vweird.f32 %v68
    %v1460 = vand.u32 %v1443, 3
    %vm1461 = vcmp.lt.s32.totalorder %v1460, 2
    %vm1462 = vcmp.eq.s32.totalorder %v1460, 0
    %v1463 = vxor.u32 %v1458, 2147483648
    %v1464 = vsel %vm1462, %v1450, %v1463
    %vm1465 = vcmp.eq.s32.totalorder %v1460, 2
    %v1466 = vxor.u32 %v1450, 2147483648
    %v1467 = vsel %vm1465, %v1466, %v1458
    %v1468 = vsel %vm1461, %v1464, %v1467
    %v1469 = vsel %vm1459, nan, %v1468
    %v1470 = vand.u32 2147483647, %v69
    %vm1471 = vcmp.le.f32.partialorder %v1470, 0.7853982
    %vm1472 = vcmp.lt.s32.totalorder %v69, 0
    %v1473 = vand.u32 %v69, 2139095040
    %v1474 = vshrl.u32 %v1473, 23
    %v1475 = vsub.s32 %v1474, 127
    %v1476 = vand.u32 2147483647, %v69
    %v1477 = vand.u32 %v1476, 8388607
    %v1478 = vor.u32 %v1477, 8388608
    %v1479 = vsub.s32 0, %v1478
    %v1480 = vadd.s32 %v1475, 1
    %vm1481 = vcmp.gt.s32.totalorder %v1480, 0
    %v1482 = vsel %vm1481, %v1480, 0
    %v1483 = vshrl.u32 %v1482, 5
    %v1484 = vand.u32 %v1482, 31
    %v1485 = vsub.s32 32, %v1484
    %v1486 = vshrl.u32 683565275, %v1485
    %v1487 = vshll.u32 683565275, %v1484
    %v1488 = vshrl.u32 2475754826, %v1485
    %v1489 = vor.u32 %v1487, %v1488
    %v1490 = vshll.u32 2475754826, %v1484
    %v1491 = vshrl.u32 2131351028, %v1485
    %v1492 = vor.u32 %v1490, %v1491
    %v1493 = vshll.u32 2131351028, %v1484
    %v1494 = vshrl.u32 2102212464, %v1485
    %v1495 = vor.u32 %v1493, %v1494
    %v1496 = vshll.u32 2102212464, %v1484
    %v1497 = vshrl.u32 920167782, %v1485
    %v1498 = vor.u32 %v1496, %v1497
    %v1499 = vshll.u32 920167782, %v1484
    %v1500 = vshrl.u32 1326507024, %v1485
    %v1501 = vor.u32 %v1499, %v1500
    %vm1502 = vcmp.lt.s32.totalorder %v1483, 1
    %vm1503 = vcmp.lt.s32.totalorder %v1483, 2
    %vm1504 = vcmp.lt.s32.totalorder %v1483, 3
    %vm1505 = vcmp.lt.s32.totalorder %v1483, 4
    %v1506 = vsel %vm1502, %v1486, %v1489
    %v1507 = vsel %vm1505, %v1495, 2102212464
    %v1508 = vsel %vm1504, %v1492, %v1507
    %v1509 = vsel %vm1503, %v1506, %v1508
    %v1510 = vsel %vm1502, %v1489, %v1492
    %v1511 = vsel %vm1505, %v1498, 920167782
    %v1512 = vsel %vm1504, %v1495, %v1511
    %v1513 = vsel %vm1503, %v1510, %v1512
    %v1514 = vsel %vm1502, %v1492, %v1495
    %v1515 = vsel %vm1505, %v1501, 1326507024
    %v1516 = vsel %vm1504, %v1498, %v1515
    %v1517 = vsel %vm1503, %v1514, %v1516
    %v1518 = vshll.u32 %v1478, 8
    %v1519 = vand.u32 %v1518, 65535
    %v1520 = vshrl.u32 %v1518, 16
    %v1521 = vand.u32 %v1517, 65535
    %v1522 = vshrl.u32 %v1517, 16
    %v1523 = vmul.u32 %v1519, %v1521
    %v1524 = vmul.u32 %v1519, %v1522
    %v1525 = vmul.u32 %v1520, %v1521
    %v1526 = vmul.u32 %v1520, %v1522
    %v1527 = vshll.u32 %v1524, 16
    %v1528 = vshrl.u32 %v1524, 16
    %v1529 = vshll.u32 %v1525, 16
    %v1530 = vshrl.u32 %v1525, 16
    %vm1531 = vc.u32 %v1523, %v1527
    %v1532 = vsel %vm1531, 1, 0
    %v1533 = vadd.s32 %v1523, %v1527
    %v1534 = vadd.s32 %v1526, %v1532
    %vm1535 = vc.u32 %v1533, %v1529
    %v1536 = vsel %vm1535, 1, 0
    %v1537 = vadd.s32 %v1533, %v1529
    %v1538 = vadd.s32 %v1534, %v1536
    %v1539 = vadd.s32 %v1538, %v1528
    %v1540 = vadd.s32 %v1539, %v1530
    %v1541 = vand.u32 %v1518, 65535
    %v1542 = vshrl.u32 %v1518, 16
    %v1543 = vand.u32 %v1513, 65535
    %v1544 = vshrl.u32 %v1513, 16
    %v1545 = vmul.u32 %v1541, %v1543
    %v1546 = vmul.u32 %v1541, %v1544
    %v1547 = vmul.u32 %v1542, %v1543
    %v1548 = vmul.u32 %v1542, %v1544
    %v1549 = vshll.u32 %v1546, 16
    %v1550 = vshrl.u32 %v1546, 16
    %v1551 = vshll.u32 %v1547, 16
    %v1552 = vshrl.u32 %v1547, 16
    %vm1553 = vc.u32 %v1545, %v1549
    %v1554 = vsel %vm1553, 1, 0
    %v1555 = vadd.s32 %v1545, %v1549
    %v1556 = vadd.s32 %v1548, %v1554
    %vm1557 = vc.u32 %v1555, %v1551
    %v1558 = vsel %vm1557, 1, 0
    %v1559 = vadd.s32 %v1555, %v1551
    %v1560 = vadd.s32 %v1556, %v1558
    %v1561 = vadd.s32 %v1560, %v1550
    %v1562 = vadd.s32 %v1561, %v1552
    %v1563 = vmul.u32 %v1518, %v1509
    %v1564 = vadd.s32 %v1540, %v1559
    %vm1565 = vc.u32 %v1540, %v1559
    %v1566 = vadd.s32 %v1562, 1
    %v1567 = vsel %vm1565, %v1566, %v1562
    %v1568 = vadd.s32 %v1563, %v1567
    %v1569 = vadd.s32 %v1568, 536870912
    %v1570 = vshrl.u32 %v1569, 30
    %v1571 = vshll.u32 %v1570, 30
    %v1572 = vsub.s32 %v1568, %v1571
    %vm1573 = vcmp.lt.s32.totalorder %v1572, 0
    %v1574 = vsub.s32 0, %v1572
    %v1575 = vsel %vm1573, %v1574, %v1572
    %v1576 = vclz %v1575
    %v1577 = vsub.s32 %v1576, 2
    %vm1578 = vcmp.gt.s32.totalorder 0, %v1577
    %v1579 = vsel %vm1578, 0, %v1577
    %v1580 = vsub.s32 32, %v1579
    %v1581 = vshll.u32 %v1572, %v1579
    %v1582 = vshrl.u32 %v1564, %v1580
    %v1583 = vor.u32 %v1581, %v1582
    %v1584 = vsub.s32 4294967266, %v1579
    %v1585 = vadd.s32 %v1584, 127
    %v1586 = vshll.u32 %v1585, 23
    %v1587 = vor.u32 4788187, %v1586
    %v1588 = vand.u32 2147483647, %v1587
    %v1590 = vcvt.s32.f32 %v1583
    %v1591 = vmul.f32 %v1590, %v1588
    %v1592 = vxor.u32 %v1591, 2147483648
    %v1593 = vsel %vm1472, %v1592, %v1591
    %v1594 = vsub.s32 4, %v1570
    %v1595 = vsel %vm1472, %v1594, %v1570
    %v1596 = vsel %vm1471, %v69, %v1593
    %v1597 = vsel %vm1471, 0, %v1595
    %v1598 = vmul.f32 %v1596, %v1596
    %v1599 = vmul.f32 %v1598, -0.001358992
    %v1600 = vadd.f32 %v1599, 0.041655596
    %v1601 = vmul.f32 %v1598, %v1600
    %v1602 = vadd.f32 %v1601, -0.4999988
    %v1603 = vmul.f32 %v1598, %v1602
    %v1604 = vadd.f32 1.0, %v1603
    %v1605 = vmul.f32 %v1596, %v1596
    %v1606 = vmul.f32 %v1605, -0.00019511016
    %v1607 = vadd.f32 %v1606, 0.008332121
    %v1608 = vmul.f32 %v1605, %v1607
    %v1609 = vadd.f32 %v1608, -0.16666654
    %v1610 = vmul.f32 %v1605, %v1609
    %v1611 = vadd.f32 %v1610, 1.0
    %v1612 = vmul.f32 %v1611, %v1596
    %vm1613 = vweird.f32 %v69
    %v1614 = vand.u32 %v1597, 3
    %vm1615 = vcmp.lt.s32.totalorder %v1614, 2
    %vm1616 = vcmp.eq.s32.totalorder %v1614, 0
    %v1617 = vxor.u32 %v1612, 2147483648
    %v1618 = vsel %vm1616, %v1604, %v1617
    %vm1619 = vcmp.eq.s32.totalorder %v1614, 2
    %v1620 = vxor.u32 %v1604, 2147483648
    %v1621 = vsel %vm1619, %v1620, %v1612
    %v1622 = vsel %vm1615, %v1618, %v1621
    %v1623 = vsel %vm1613, nan, %v1622
    %v1624 = vand.u32 2147483647, %v70
    %vm1625 = vcmp.le.f32.partialorder %v1624, 0.7853982
    %vm1626 = vcmp.lt.s32.totalorder %v70, 0
    %v1627 = vand.u32 %v70, 2139095040
    %v1628 = vshrl.u32 %v1627, 23
    %v1629 = vsub.s32 %v1628, 127
    %v1630 = vand.u32 2147483647, %v70
    %v1631 = vand.u32 %v1630, 8388607
    %v1632 = vor.u32 %v1631, 8388608
    %v1633 = vsub.s32 0, %v1632
    %v1634 = vadd.s32 %v1629, 1
    %vm1635 = vcmp.gt.s32.totalorder %v1634, 0
    %v1636 = vsel %vm1635, %v1634, 0
    %v1637 = vshrl.u32 %v1636, 5
    %v1638 = vand.u32 %v1636, 31
    %v1639 = vsub.s32 32, %v1638
    %v1640 = vshrl.u32 683565275, %v1639
    %v1641 = vshll.u32 683565275, %v1638
    %v1642 = vshrl.u32 2475754826, %v1639
    %v1643 = vor.u32 %v1641, %v1642
    %v1644 = vshll.u32 2475754826, %v1638
    %v1645 = vshrl.u32 2131351028, %v1639
    %v1646 = vor.u32 %v1644, %v1645
    %v1647 = vshll.u32 2131351028, %v1638
    %v1648 = vshrl.u32 2102212464, %v1639
    %v1649 = vor.u32 %v1647, %v1648
    %v1650 = vshll.u32 2102212464, %v1638
    %v1651 = vshrl.u32 920167782, %v1639
    %v1652 = vor.u32 %v1650, %v1651
    %v1653 = vshll.u32 920167782, %v1638
    %v1654 = vshrl.u32 1326507024, %v1639
    %v1655 = vor.u32 %v1653, %v1654
    %vm1656 = vcmp.lt.s32.totalorder %v1637, 1
    %vm1657 = vcmp.lt.s32.totalorder %v1637, 2
    %vm1658 = vcmp.lt.s32.totalorder %v1637, 3
    %vm1659 = vcmp.lt.s32.totalorder %v1637, 4
    %v1660 = vsel %vm1656, %v1640, %v1643
    %v1661 = vsel %vm1659, %v1649, 2102212464
    %v1662 = vsel %vm1658, %v1646, %v1661
    %v1663 = vsel %vm1657, %v1660, %v1662
    %v1664 = vsel %vm1656, %v1643, %v1646
    %v1665 = vsel %vm1659, %v1652, 920167782
    %v1666 = vsel %vm1658, %v1649, %v1665
    %v1667 = vsel %vm1657, %v1664, %v1666
    %v1668 = vsel %vm1656, %v1646, %v1649
    %v1669 = vsel %vm1659, %v1655, 1326507024
    %v1670 = vsel %vm1658, %v1652, %v1669
    %v1671 = vsel %vm1657, %v1668, %v1670
    %v1672 = vshll.u32 %v1632, 8
    %v1673 = vand.u32 %v1672, 65535
    %v1674 = vshrl.u32 %v1672, 16
    %v1675 = vand.u32 %v1671, 65535
    %v1676 = vshrl.u32 %v1671, 16
    %v1677 = vmul.u32 %v1673, %v1675
    %v1678 = vmul.u32 %v1673, %v1676
    %v1679 = vmul.u32 %v1674, %v1675
    %v1680 = vmul.u32 %v1674, %v1676
    %v1681 = vshll.u32 %v1678, 16
    %v1682 = vshrl.u32 %v1678, 16
    %v1683 = vshll.u32 %v1679, 16
    %v1684 = vshrl.u32 %v1679, 16
    %vm1685 = vc.u32 %v1677, %v1681
    %v1686 = vsel %vm1685, 1, 0
    %v1687 = vadd.s32 %v1677, %v1681
    %v1688 = vadd.s32 %v1680, %v1686
    %vm1689 = vc.u32 %v1687, %v1683
    %v1690 = vsel %vm1689, 1, 0
    %v1691 = vadd.s32 %v1687, %v1683
    %v1692 = vadd.s32 %v1688, %v1690
    %v1693 = vadd.s32 %v1692, %v1682
    %v1694 = vadd.s32 %v1693, %v1684
    %v1695 = vand.u32 %v1672, 65535
    %v1696 = vshrl.u32 %v1672, 16
    %v1697 = vand.u32 %v1667, 65535
    %v1698 = vshrl.u32 %v1667, 16
    %v1699 = vmul.u32 %v1695, %v1697
    %v1700 = vmul.u32 %v1695, %v1698
    %v1701 = vmul.u32 %v1696, %v1697
    %v1702 = vmul.u32 %v1696, %v1698
    %v1703 = vshll.u32 %v1700, 16
    %v1704 = vshrl.u32 %v1700, 16
    %v1705 = vshll.u32 %v1701, 16
    %v1706 = vshrl.u32 %v1701, 16
    %vm1707 = vc.u32 %v1699, %v1703
    %v1708 = vsel %vm1707, 1, 0
    %v1709 = vadd.s32 %v1699, %v1703
    %v1710 = vadd.s32 %v1702, %v1708
    %vm1711 = vc.u32 %v1709, %v1705
    %v1712 = vsel %vm1711, 1, 0
    %v1713 = vadd.s32 %v1709, %v1705
    %v1714 = vadd.s32 %v1710, %v1712
    %v1715 = vadd.s32 %v1714, %v1704
    %v1716 = vadd.s32 %v1715, %v1706
    %v1717 = vmul.u32 %v1672, %v1663
    %v1718 = vadd.s32 %v1694, %v1713
    %vm1719 = vc.u32 %v1694, %v1713
    %v1720 = vadd.s32 %v1716, 1
    %v1721 = vsel %vm1719, %v1720, %v1716
    %v1722 = vadd.s32 %v1717, %v1721
    %v1723 = vadd.s32 %v1722, 536870912
    %v1724 = vshrl.u32 %v1723, 30
    %v1725 = vshll.u32 %v1724, 30
    %v1726 = vsub.s32 %v1722, %v1725
    %vm1727 = vcmp.lt.s32.totalorder %v1726, 0
    %v1728 = vsub.s32 0, %v1726
    %v1729 = vsel %vm1727, %v1728, %v1726
    %v1730 = vclz %v1729
    %v1731 = vsub.s32 %v1730, 2
    %vm1732 = vcmp.gt.s32.totalorder 0, %v1731
    %v1733 = vsel %vm1732, 0, %v1731
    %v1734 = vsub.s32 32, %v1733
    %v1735 = vshll.u32 %v1726, %v1733
    %v1736 = vshrl.u32 %v1718, %v1734
    %v1737 = vor.u32 %v1735, %v1736
    %v1738 = vsub.s32 4294967266, %v1733
    %v1739 = vadd.s32 %v1738, 127
    %v1740 = vshll.u32 %v1739, 23
    %v1741 = vor.u32 4788187, %v1740
    %v1742 = vand.u32 2147483647, %v1741
    %v1744 = vcvt.s32.f32 %v1737
    %v1745 = vmul.f32 %v1744, %v1742
    %v1746 = vxor.u32 %v1745, 2147483648
    %v1747 = vsel %vm1626, %v1746, %v1745
    %v1748 = vsub.s32 4, %v1724
    %v1749 = vsel %vm1626, %v1748, %v1724
    %v1750 = vsel %vm1625, %v70, %v1747
    %v1751 = vsel %vm1625, 0, %v1749
    %v1752 = vmul.f32 %v1750, %v1750
    %v1753 = vmul.f32 %v1752, -0.001358992
    %v1754 = vadd.f32 %v1753, 0.041655596
    %v1755 = vmul.f32 %v1752, %v1754
    %v1756 = vadd.f32 %v1755, -0.4999988
    %v1757 = vmul.f32 %v1752, %v1756
    %v1758 = vadd.f32 1.0, %v1757
    %v1759 = vmul.f32 %v1750, %v1750
    %v1760 = vmul.f32 %v1759, -0.00019511016
    %v1761 = vadd.f32 %v1760, 0.008332121
    %v1762 = vmul.f32 %v1759, %v1761
    %v1763 = vadd.f32 %v1762, -0.16666654
    %v1764 = vmul.f32 %v1759, %v1763
    %v1765 = vadd.f32 %v1764, 1.0
    %v1766 = vmul.f32 %v1765, %v1750
    %vm1767 = vweird.f32 %v70
    %v1768 = vand.u32 %v1751, 3
    %vm1769 = vcmp.lt.s32.totalorder %v1768, 2
    %vm1770 = vcmp.eq.s32.totalorder %v1768, 0
    %v1771 = vxor.u32 %v1766, 2147483648
    %v1772 = vsel %vm1770, %v1758, %v1771
    %vm1773 = vcmp.eq.s32.totalorder %v1768, 2
    %v1774 = vxor.u32 %v1758, 2147483648
    %v1775 = vsel %vm1773, %v1774, %v1766
    %v1776 = vsel %vm1769, %v1772, %v1775
    %v1777 = vsel %vm1767, nan, %v1776
    %v1778 = vand.u32 2147483647, %v71
    %vm1779 = vcmp.le.f32.partialorder %v1778, 0.7853982
    %vm1780 = vcmp.lt.s32.totalorder %v71, 0
    %v1781 = vand.u32 %v71, 2139095040
    %v1782 = vshrl.u32 %v1781, 23
    %v1783 = vsub.s32 %v1782, 127
    %v1784 = vand.u32 2147483647, %v71
    %v1785 = vand.u32 %v1784, 8388607
    %v1786 = vor.u32 %v1785, 8388608
    %v1787 = vsub.s32 0, %v1786
    %v1788 = vadd.s32 %v1783, 1
    %vm1789 = vcmp.gt.s32.totalorder %v1788, 0
    %v1790 = vsel %vm1789, %v1788, 0
    %v1791 = vshrl.u32 %v1790, 5
    %v1792 = vand.u32 %v1790, 31
    %v1793 = vsub.s32 32, %v1792
    %v1794 = vshrl.u32 683565275, %v1793
    %v1795 = vshll.u32 683565275, %v1792
    %v1796 = vshrl.u32 2475754826, %v1793
    %v1797 = vor.u32 %v1795, %v1796
    %v1798 = vshll.u32 2475754826, %v1792
    %v1799 = vshrl.u32 2131351028, %v1793
    %v1800 = vor.u32 %v1798, %v1799
    %v1801 = vshll.u32 2131351028, %v1792
    %v1802 = vshrl.u32 2102212464, %v1793
    %v1803 = vor.u32 %v1801, %v1802
    %v1804 = vshll.u32 2102212464, %v1792
    %v1805 = vshrl.u32 920167782, %v1793
    %v1806 = vor.u32 %v1804, %v1805
    %v1807 = vshll.u32 920167782, %v1792
    %v1808 = vshrl.u32 1326507024, %v1793
    %v1809 = vor.u32 %v1807, %v1808
    %vm1810 = vcmp.lt.s32.totalorder %v1791, 1
    %vm1811 = vcmp.lt.s32.totalorder %v1791, 2
    %vm1812 = vcmp.lt.s32.totalorder %v1791, 3
    %vm1813 = vcmp.lt.s32.totalorder %v1791, 4
    %v1814 = vsel %vm1810, %v1794, %v1797
    %v1815 = vsel %vm1813, %v1803, 2102212464
    %v1816 = vsel %vm1812, %v1800, %v1815
    %v1817 = vsel %vm1811, %v1814, %v1816
    %v1818 = vsel %vm1810, %v1797, %v1800
    %v1819 = vsel %vm1813, %v1806, 920167782
    %v1820 = vsel %vm1812, %v1803, %v1819
    %v1821 = vsel %vm1811, %v1818, %v1820
    %v1822 = vsel %vm1810, %v1800, %v1803
    %v1823 = vsel %vm1813, %v1809, 1326507024
    %v1824 = vsel %vm1812, %v1806, %v1823
    %v1825 = vsel %vm1811, %v1822, %v1824
    %v1826 = vshll.u32 %v1786, 8
    %v1827 = vand.u32 %v1826, 65535
    %v1828 = vshrl.u32 %v1826, 16
    %v1829 = vand.u32 %v1825, 65535
    %v1830 = vshrl.u32 %v1825, 16
    %v1831 = vmul.u32 %v1827, %v1829
    %v1832 = vmul.u32 %v1827, %v1830
    %v1833 = vmul.u32 %v1828, %v1829
    %v1834 = vmul.u32 %v1828, %v1830
    %v1835 = vshll.u32 %v1832, 16
    %v1836 = vshrl.u32 %v1832, 16
    %v1837 = vshll.u32 %v1833, 16
    %v1838 = vshrl.u32 %v1833, 16
    %vm1839 = vc.u32 %v1831, %v1835
    %v1840 = vsel %vm1839, 1, 0
    %v1841 = vadd.s32 %v1831, %v1835
    %v1842 = vadd.s32 %v1834, %v1840
    %vm1843 = vc.u32 %v1841, %v1837
    %v1844 = vsel %vm1843, 1, 0
    %v1845 = vadd.s32 %v1841, %v1837
    %v1846 = vadd.s32 %v1842, %v1844
    %v1847 = vadd.s32 %v1846, %v1836
    %v1848 = vadd.s32 %v1847, %v1838
    %v1849 = vand.u32 %v1826, 65535
    %v1850 = vshrl.u32 %v1826, 16
    %v1851 = vand.u32 %v1821, 65535
    %v1852 = vshrl.u32 %v1821, 16
    %v1853 = vmul.u32 %v1849, %v1851
    %v1854 = vmul.u32 %v1849, %v1852
    %v1855 = vmul.u32 %v1850, %v1851
    %v1856 = vmul.u32 %v1850, %v1852
    %v1857 = vshll.u32 %v1854, 16
    %v1858 = vshrl.u32 %v1854, 16
    %v1859 = vshll.u32 %v1855, 16
    %v1860 = vshrl.u32 %v1855, 16
    %vm1861 = vc.u32 %v1853, %v1857
    %v1862 = vsel %vm1861, 1, 0
    %v1863 = vadd.s32 %v1853, %v1857
    %v1864 = vadd.s32 %v1856, %v1862
    %vm1865 = vc.u32 %v1863, %v1859
    %v1866 = vsel %vm1865, 1, 0
    %v1867 = vadd.s32 %v1863, %v1859
    %v1868 = vadd.s32 %v1864, %v1866
    %v1869 = vadd.s32 %v1868, %v1858
    %v1870 = vadd.s32 %v1869, %v1860
    %v1871 = vmul.u32 %v1826, %v1817
    %v1872 = vadd.s32 %v1848, %v1867
    %vm1873 = vc.u32 %v1848, %v1867
    %v1874 = vadd.s32 %v1870, 1
    %v1875 = vsel %vm1873, %v1874, %v1870
    %v1876 = vadd.s32 %v1871, %v1875
    %v1877 = vadd.s32 %v1876, 536870912
    %v1878 = vshrl.u32 %v1877, 30
    %v1879 = vshll.u32 %v1878, 30
    %v1880 = vsub.s32 %v1876, %v1879
    %vm1881 = vcmp.lt.s32.totalorder %v1880, 0
    %v1882 = vsub.s32 0, %v1880
    %v1883 = vsel %vm1881, %v1882, %v1880
    %v1884 = vclz %v1883
    %v1885 = vsub.s32 %v1884, 2
    %vm1886 = vcmp.gt.s32.totalorder 0, %v1885
    %v1887 = vsel %vm1886, 0, %v1885
    %v1888 = vsub.s32 32, %v1887
    %v1889 = vshll.u32 %v1880, %v1887
    %v1890 = vshrl.u32 %v1872, %v1888
    %v1891 = vor.u32 %v1889, %v1890
    %v1892 = vsub.s32 4294967266, %v1887
    %v1893 = vadd.s32 %v1892, 127
    %v1894 = vshll.u32 %v1893, 23
    %v1895 = vor.u32 4788187, %v1894
    %v1896 = vand.u32 2147483647, %v1895
    %v1898 = vcvt.s32.f32 %v1891
    %v1899 = vmul.f32 %v1898, %v1896
    %v1900 = vxor.u32 %v1899, 2147483648
    %v1901 = vsel %vm1780, %v1900, %v1899
    %v1902 = vsub.s32 4, %v1878
    %v1903 = vsel %vm1780, %v1902, %v1878
    %v1904 = vsel %vm1779, %v71, %v1901
    %v1905 = vsel %vm1779, 0, %v1903
    %v1906 = vmul.f32 %v1904, %v1904
    %v1907 = vmul.f32 %v1906, -0.001358992
    %v1908 = vadd.f32 %v1907, 0.041655596
    %v1909 = vmul.f32 %v1906, %v1908
    %v1910 = vadd.f32 %v1909, -0.4999988
    %v1911 = vmul.f32 %v1906, %v1910
    %v1912 = vadd.f32 1.0, %v1911
    %v1913 = vmul.f32 %v1904, %v1904
    %v1914 = vmul.f32 %v1913, -0.00019511016
    %v1915 = vadd.f32 %v1914, 0.008332121
    %v1916 = vmul.f32 %v1913, %v1915
    %v1917 = vadd.f32 %v1916, -0.16666654
    %v1918 = vmul.f32 %v1913, %v1917
    %v1919 = vadd.f32 %v1918, 1.0
    %v1920 = vmul.f32 %v1919, %v1904
    %vm1921 = vweird.f32 %v71
    %v1922 = vand.u32 %v1905, 3
    %vm1923 = vcmp.lt.s32.totalorder %v1922, 2
    %vm1924 = vcmp.eq.s32.totalorder %v1922, 0
    %v1925 = vxor.u32 %v1920, 2147483648
    %v1926 = vsel %vm1924, %v1912, %v1925
    %vm1927 = vcmp.eq.s32.totalorder %v1922, 2
    %v1928 = vxor.u32 %v1912, 2147483648
    %v1929 = vsel %vm1927, %v1928, %v1920
    %v1930 = vsel %vm1923, %v1926, %v1929
    %v1931 = vsel %vm1921, nan, %v1930
    %v1932 = vand.u32 2147483647, %v72
    %vm1933 = vcmp.le.f32.partialorder %v1932, 0.7853982
    %vm1934 = vcmp.lt.s32.totalorder %v72, 0
    %v1935 = vand.u32 %v72, 2139095040
    %v1936 = vshrl.u32 %v1935, 23
    %v1937 = vsub.s32 %v1936, 127
    %v1938 = vand.u32 2147483647, %v72
    %v1939 = vand.u32 %v1938, 8388607
    %v1940 = vor.u32 %v1939, 8388608
    %v1941 = vsub.s32 0, %v1940
    %v1942 = vadd.s32 %v1937, 1
    %vm1943 = vcmp.gt.s32.totalorder %v1942, 0
    %v1944 = vsel %vm1943, %v1942, 0
    %v1945 = vshrl.u32 %v1944, 5
    %v1946 = vand.u32 %v1944, 31
    %v1947 = vsub.s32 32, %v1946
    %v1948 = vshrl.u32 683565275, %v1947
    %v1949 = vshll.u32 683565275, %v1946
    %v1950 = vshrl.u32 2475754826, %v1947
    %v1951 = vor.u32 %v1949, %v1950
    %v1952 = vshll.u32 2475754826, %v1946
    %v1953 = vshrl.u32 2131351028, %v1947
    %v1954 = vor.u32 %v1952, %v1953
    %v1955 = vshll.u32 2131351028, %v1946
    %v1956 = vshrl.u32 2102212464, %v1947
    %v1957 = vor.u32 %v1955, %v1956
    %v1958 = vshll.u32 2102212464, %v1946
    %v1959 = vshrl.u32 920167782, %v1947
    %v1960 = vor.u32 %v1958, %v1959
    %v1961 = vshll.u32 920167782, %v1946
    %v1962 = vshrl.u32 1326507024, %v1947
    %v1963 = vor.u32 %v1961, %v1962
    %vm1964 = vcmp.lt.s32.totalorder %v1945, 1
    %vm1965 = vcmp.lt.s32.totalorder %v1945, 2
    %vm1966 = vcmp.lt.s32.totalorder %v1945, 3
    %vm1967 = vcmp.lt.s32.totalorder %v1945, 4
    %v1968 = vsel %vm1964, %v1948, %v1951
    %v1969 = vsel %vm1967, %v1957, 2102212464
    %v1970 = vsel %vm1966, %v1954, %v1969
    %v1971 = vsel %vm1965, %v1968, %v1970
    %v1972 = vsel %vm1964, %v1951, %v1954
    %v1973 = vsel %vm1967, %v1960, 920167782
    %v1974 = vsel %vm1966, %v1957, %v1973
    %v1975 = vsel %vm1965, %v1972, %v1974
    %v1976 = vsel %vm1964, %v1954, %v1957
    %v1977 = vsel %vm1967, %v1963, 1326507024
    %v1978 = vsel %vm1966, %v1960, %v1977
    %v1979 = vsel %vm1965, %v1976, %v1978
    %v1980 = vshll.u32 %v1940, 8
    %v1981 = vand.u32 %v1980, 65535
    %v1982 = vshrl.u32 %v1980, 16
    %v1983 = vand.u32 %v1979, 65535
    %v1984 = vshrl.u32 %v1979, 16
    %v1985 = vmul.u32 %v1981, %v1983
    %v1986 = vmul.u32 %v1981, %v1984
    %v1987 = vmul.u32 %v1982, %v1983
    %v1988 = vmul.u32 %v1982, %v1984
    %v1989 = vshll.u32 %v1986, 16
    %v1990 = vshrl.u32 %v1986, 16
    %v1991 = vshll.u32 %v1987, 16
    %v1992 = vshrl.u32 %v1987, 16
    %vm1993 = vc.u32 %v1985, %v1989
    %v1994 = vsel %vm1993, 1, 0
    %v1995 = vadd.s32 %v1985, %v1989
    %v1996 = vadd.s32 %v1988, %v1994
    %vm1997 = vc.u32 %v1995, %v1991
    %v1998 = vsel %vm1997, 1, 0
    %v1999 = vadd.s32 %v1995, %v1991
    %v2000 = vadd.s32 %v1996, %v1998
    %v2001 = vadd.s32 %v2000, %v1990
    %v2002 = vadd.s32 %v2001, %v1992
    %v2003 = vand.u32 %v1980, 65535
    %v2004 = vshrl.u32 %v1980, 16
    %v2005 = vand.u32 %v1975, 65535
    %v2006 = vshrl.u32 %v1975, 16
    %v2007 = vmul.u32 %v2003, %v2005
    %v2008 = vmul.u32 %v2003, %v2006
    %v2009 = vmul.u32 %v2004, %v2005
    %v2010 = vmul.u32 %v2004, %v2006
    %v2011 = vshll.u32 %v2008, 16
    %v2012 = vshrl.u32 %v2008, 16
    %v2013 = vshll.u32 %v2009, 16
    %v2014 = vshrl.u32 %v2009, 16
    %vm2015 = vc.u32 %v2007, %v2011
    %v2016 = vsel %vm2015, 1, 0
    %v2017 = vadd.s32 %v2007, %v2011
    %v2018 = vadd.s32 %v2010, %v2016
    %vm2019 = vc.u32 %v2017, %v2013
    %v2020 = vsel %vm2019, 1, 0
    %v2021 = vadd.s32 %v2017, %v2013
    %v2022 = vadd.s32 %v2018, %v2020
    %v2023 = vadd.s32 %v2022, %v2012
    %v2024 = vadd.s32 %v2023, %v2014
    %v2025 = vmul.u32 %v1980, %v1971
    %v2026 = vadd.s32 %v2002, %v2021
    %vm2027 = vc.u32 %v2002, %v2021
    %v2028 = vadd.s32 %v2024, 1
    %v2029 = vsel %vm2027, %v2028, %v2024
    %v2030 = vadd.s32 %v2025, %v2029
    %v2031 = vadd.s32 %v2030, 536870912
    %v2032 = vshrl.u32 %v2031, 30
    %v2033 = vshll.u32 %v2032, 30
    %v2034 = vsub.s32 %v2030, %v2033
    %vm2035 = vcmp.lt.s32.totalorder %v2034, 0
    %v2036 = vsub.s32 0, %v2034
    %v2037 = vsel %vm2035, %v2036, %v2034
    %v2038 = vclz %v2037
    %v2039 = vsub.s32 %v2038, 2
    %vm2040 = vcmp.gt.s32.totalorder 0, %v2039
    %v2041 = vsel %vm2040, 0, %v2039
    %v2042 = vsub.s32 32, %v2041
    %v2043 = vshll.u32 %v2034, %v2041
    %v2044 = vshrl.u32 %v2026, %v2042
    %v2045 = vor.u32 %v2043, %v2044
    %v2046 = vsub.s32 4294967266, %v2041
    %v2047 = vadd.s32 %v2046, 127
    %v2048 = vshll.u32 %v2047, 23
    %v2049 = vor.u32 4788187, %v2048
    %v2050 = vand.u32 2147483647, %v2049
    %v2052 = vcvt.s32.f32 %v2045
    %v2053 = vmul.f32 %v2052, %v2050
    %v2054 = vxor.u32 %v2053, 2147483648
    %v2055 = vsel %vm1934, %v2054, %v2053
    %v2056 = vsub.s32 4, %v2032
    %v2057 = vsel %vm1934, %v2056, %v2032
    %v2058 = vsel %vm1933, %v72, %v2055
    %v2059 = vsel %vm1933, 0, %v2057
    %v2060 = vmul.f32 %v2058, %v2058
    %v2061 = vmul.f32 %v2060, -0.001358992
    %v2062 = vadd.f32 %v2061, 0.041655596
    %v2063 = vmul.f32 %v2060, %v2062
    %v2064 = vadd.f32 %v2063, -0.4999988
    %v2065 = vmul.f32 %v2060, %v2064
    %v2066 = vadd.f32 1.0, %v2065
    %v2067 = vmul.f32 %v2058, %v2058
    %v2068 = vmul.f32 %v2067, -0.00019511016
    %v2069 = vadd.f32 %v2068, 0.008332121
    %v2070 = vmul.f32 %v2067, %v2069
    %v2071 = vadd.f32 %v2070, -0.16666654
    %v2072 = vmul.f32 %v2067, %v2071
    %v2073 = vadd.f32 %v2072, 1.0
    %v2074 = vmul.f32 %v2073, %v2058
    %vm2075 = vweird.f32 %v72
    %v2076 = vand.u32 %v2059, 3
    %vm2077 = vcmp.lt.s32.totalorder %v2076, 2
    %vm2078 = vcmp.eq.s32.totalorder %v2076, 0
    %v2079 = vxor.u32 %v2074, 2147483648
    %v2080 = vsel %vm2078, %v2066, %v2079
    %vm2081 = vcmp.eq.s32.totalorder %v2076, 2
    %v2082 = vxor.u32 %v2066, 2147483648
    %v2083 = vsel %vm2081, %v2082, %v2074
    %v2084 = vsel %vm2077, %v2080, %v2083
    %v2085 = vsel %vm2075, nan, %v2084
    %v2086 = vand.u32 2147483647, %v73
    %vm2087 = vcmp.le.f32.partialorder %v2086, 0.7853982
    %vm2088 = vcmp.lt.s32.totalorder %v73, 0
    %v2089 = vand.u32 %v73, 2139095040
    %v2090 = vshrl.u32 %v2089, 23
    %v2091 = vsub.s32 %v2090, 127
    %v2092 = vand.u32 2147483647, %v73
    %v2093 = vand.u32 %v2092, 8388607
    %v2094 = vor.u32 %v2093, 8388608
    %v2095 = vsub.s32 0, %v2094
    %v2096 = vadd.s32 %v2091, 1
    %vm2097 = vcmp.gt.s32.totalorder %v2096, 0
    %v2098 = vsel %vm2097, %v2096, 0
    %v2099 = vshrl.u32 %v2098, 5
    %v2100 = vand.u32 %v2098, 31
    %v2101 = vsub.s32 32, %v2100
    %v2102 = vshrl.u32 683565275, %v2101
    %v2103 = vshll.u32 683565275, %v2100
    %v2104 = vshrl.u32 2475754826, %v2101
    %v2105 = vor.u32 %v2103, %v2104
    %v2106 = vshll.u32 2475754826, %v2100
    %v2107 = vshrl.u32 2131351028, %v2101
    %v2108 = vor.u32 %v2106, %v2107
    %v2109 = vshll.u32 2131351028, %v2100
    %v2110 = vshrl.u32 2102212464, %v2101
    %v2111 = vor.u32 %v2109, %v2110
    %v2112 = vshll.u32 2102212464, %v2100
    %v2113 = vshrl.u32 920167782, %v2101
    %v2114 = vor.u32 %v2112, %v2113
    %v2115 = vshll.u32 920167782, %v2100
    %v2116 = vshrl.u32 1326507024, %v2101
    %v2117 = vor.u32 %v2115, %v2116
    %vm2118 = vcmp.lt.s32.totalorder %v2099, 1
    %vm2119 = vcmp.lt.s32.totalorder %v2099, 2
    %vm2120 = vcmp.lt.s32.totalorder %v2099, 3
    %vm2121 = vcmp.lt.s32.totalorder %v2099, 4
    %v2122 = vsel %vm2118, %v2102, %v2105
    %v2123 = vsel %vm2121, %v2111, 2102212464
    %v2124 = vsel %vm2120, %v2108, %v2123
    %v2125 = vsel %vm2119, %v2122, %v2124
    %v2126 = vsel %vm2118, %v2105, %v2108
    %v2127 = vsel %vm2121, %v2114, 920167782
    %v2128 = vsel %vm2120, %v2111, %v2127
    %v2129 = vsel %vm2119, %v2126, %v2128
    %v2130 = vsel %vm2118, %v2108, %v2111
    %v2131 = vsel %vm2121, %v2117, 1326507024
    %v2132 = vsel %vm2120, %v2114, %v2131
    %v2133 = vsel %vm2119, %v2130, %v2132
    %v2134 = vshll.u32 %v2094, 8
    %v2135 = vand.u32 %v2134, 65535
    %v2136 = vshrl.u32 %v2134, 16
    %v2137 = vand.u32 %v2133, 65535
    %v2138 = vshrl.u32 %v2133, 16
    %v2139 = vmul.u32 %v2135, %v2137
    %v2140 = vmul.u32 %v2135, %v2138
    %v2141 = vmul.u32 %v2136, %v2137
    %v2142 = vmul.u32 %v2136, %v2138
    %v2143 = vshll.u32 %v2140, 16
    %v2144 = vshrl.u32 %v2140, 16
    %v2145 = vshll.u32 %v2141, 16
    %v2146 = vshrl.u32 %v2141, 16
    %vm2147 = vc.u32 %v2139, %v2143
    %v2148 = vsel %vm2147, 1, 0
    %v2149 = vadd.s32 %v2139, %v2143
    %v2150 = vadd.s32 %v2142, %v2148
    %vm2151 = vc.u32 %v2149, %v2145
    %v2152 = vsel %vm2151, 1, 0
    %v2153 = vadd.s32 %v2149, %v2145
    %v2154 = vadd.s32 %v2150, %v2152
    %v2155 = vadd.s32 %v2154, %v2144
    %v2156 = vadd.s32 %v2155, %v2146
    %v2157 = vand.u32 %v2134, 65535
    %v2158 = vshrl.u32 %v2134, 16
    %v2159 = vand.u32 %v2129, 65535
    %v2160 = vshrl.u32 %v2129, 16
    %v2161 = vmul.u32 %v2157, %v2159
    %v2162 = vmul.u32 %v2157, %v2160
    %v2163 = vmul.u32 %v2158, %v2159
    %v2164 = vmul.u32 %v2158, %v2160
    %v2165 = vshll.u32 %v2162, 16
    %v2166 = vshrl.u32 %v2162, 16
    %v2167 = vshll.u32 %v2163, 16
    %v2168 = vshrl.u32 %v2163, 16
    %vm2169 = vc.u32 %v2161, %v2165
    %v2170 = vsel %vm2169, 1, 0
    %v2171 = vadd.s32 %v2161, %v2165
    %v2172 = vadd.s32 %v2164, %v2170
    %vm2173 = vc.u32 %v2171, %v2167
    %v2174 = vsel %vm2173, 1, 0
    %v2175 = vadd.s32 %v2171, %v2167
    %v2176 = vadd.s32 %v2172, %v2174
    %v2177 = vadd.s32 %v2176, %v2166
    %v2178 = vadd.s32 %v2177, %v2168
    %v2179 = vmul.u32 %v2134, %v2125
    %v2180 = vadd.s32 %v2156, %v2175
    %vm2181 = vc.u32 %v2156, %v2175
    %v2182 = vadd.s32 %v2178, 1
    %v2183 = vsel %vm2181, %v2182, %v2178
    %v2184 = vadd.s32 %v2179, %v2183
    %v2185 = vadd.s32 %v2184, 536870912
    %v2186 = vshrl.u32 %v2185, 30
    %v2187 = vshll.u32 %v2186, 30
    %v2188 = vsub.s32 %v2184, %v2187
    %vm2189 = vcmp.lt.s32.totalorder %v2188, 0
    %v2190 = vsub.s32 0, %v2188
    %v2191 = vsel %vm2189, %v2190, %v2188
    %v2192 = vclz %v2191
    %v2193 = vsub.s32 %v2192, 2
    %vm2194 = vcmp.gt.s32.totalorder 0, %v2193
    %v2195 = vsel %vm2194, 0, %v2193
    %v2196 = vsub.s32 32, %v2195
    %v2197 = vshll.u32 %v2188, %v2195
    %v2198 = vshrl.u32 %v2180, %v2196
    %v2199 = vor.u32 %v2197, %v2198
    %v2200 = vsub.s32 4294967266, %v2195
    %v2201 = vadd.s32 %v2200, 127
    %v2202 = vshll.u32 %v2201, 23
    %v2203 = vor.u32 4788187, %v2202
    %v2204 = vand.u32 2147483647, %v2203
    %v2206 = vcvt.s32.f32 %v2199
    %v2207 = vmul.f32 %v2206, %v2204
    %v2208 = vxor.u32 %v2207, 2147483648
    %v2209 = vsel %vm2088, %v2208, %v2207
    %v2210 = vsub.s32 4, %v2186
    %v2211 = vsel %vm2088, %v2210, %v2186
    %v2212 = vsel %vm2087, %v73, %v2209
    %v2213 = vsel %vm2087, 0, %v2211
    %v2214 = vmul.f32 %v2212, %v2212
    %v2215 = vmul.f32 %v2214, -0.001358992
    %v2216 = vadd.f32 %v2215, 0.041655596
    %v2217 = vmul.f32 %v2214, %v2216
    %v2218 = vadd.f32 %v2217, -0.4999988
    %v2219 = vmul.f32 %v2214, %v2218
    %v2220 = vadd.f32 1.0, %v2219
    %v2221 = vmul.f32 %v2212, %v2212
    %v2222 = vmul.f32 %v2221, -0.00019511016
    %v2223 = vadd.f32 %v2222, 0.008332121
    %v2224 = vmul.f32 %v2221, %v2223
    %v2225 = vadd.f32 %v2224, -0.16666654
    %v2226 = vmul.f32 %v2221, %v2225
    %v2227 = vadd.f32 %v2226, 1.0
    %v2228 = vmul.f32 %v2227, %v2212
    %vm2229 = vweird.f32 %v73
    %v2230 = vand.u32 %v2213, 3
    %vm2231 = vcmp.lt.s32.totalorder %v2230, 2
    %vm2232 = vcmp.eq.s32.totalorder %v2230, 0
    %v2233 = vxor.u32 %v2228, 2147483648
    %v2234 = vsel %vm2232, %v2220, %v2233
    %vm2235 = vcmp.eq.s32.totalorder %v2230, 2
    %v2236 = vxor.u32 %v2220, 2147483648
    %v2237 = vsel %vm2235, %v2236, %v2228
    %v2238 = vsel %vm2231, %v2234, %v2237
    %v2239 = vsel %vm2229, nan, %v2238
    %v2240 = vand.u32 2147483647, %v74
    %vm2241 = vcmp.le.f32.partialorder %v2240, 0.7853982
    %vm2242 = vcmp.lt.s32.totalorder %v74, 0
    %v2243 = vand.u32 %v74, 2139095040
    %v2244 = vshrl.u32 %v2243, 23
    %v2245 = vsub.s32 %v2244, 127
    %v2246 = vand.u32 2147483647, %v74
    %v2247 = vand.u32 %v2246, 8388607
    %v2248 = vor.u32 %v2247, 8388608
    %v2249 = vsub.s32 0, %v2248
    %v2250 = vadd.s32 %v2245, 1
    %vm2251 = vcmp.gt.s32.totalorder %v2250, 0
    %v2252 = vsel %vm2251, %v2250, 0
    %v2253 = vshrl.u32 %v2252, 5
    %v2254 = vand.u32 %v2252, 31
    %v2255 = vsub.s32 32, %v2254
    %v2256 = vshrl.u32 683565275, %v2255
    %v2257 = vshll.u32 683565275, %v2254
    %v2258 = vshrl.u32 2475754826, %v2255
    %v2259 = vor.u32 %v2257, %v2258
    %v2260 = vshll.u32 2475754826, %v2254
    %v2261 = vshrl.u32 2131351028, %v2255
    %v2262 = vor.u32 %v2260, %v2261
    %v2263 = vshll.u32 2131351028, %v2254
    %v2264 = vshrl.u32 2102212464, %v2255
    %v2265 = vor.u32 %v2263, %v2264
    %v2266 = vshll.u32 2102212464, %v2254
    %v2267 = vshrl.u32 920167782, %v2255
    %v2268 = vor.u32 %v2266, %v2267
    %v2269 = vshll.u32 920167782, %v2254
    %v2270 = vshrl.u32 1326507024, %v2255
    %v2271 = vor.u32 %v2269, %v2270
    %vm2272 = vcmp.lt.s32.totalorder %v2253, 1
    %vm2273 = vcmp.lt.s32.totalorder %v2253, 2
    %vm2274 = vcmp.lt.s32.totalorder %v2253, 3
    %vm2275 = vcmp.lt.s32.totalorder %v2253, 4
    %v2276 = vsel %vm2272, %v2256, %v2259
    %v2277 = vsel %vm2275, %v2265, 2102212464
    %v2278 = vsel %vm2274, %v2262, %v2277
    %v2279 = vsel %vm2273, %v2276, %v2278
    %v2280 = vsel %vm2272, %v2259, %v2262
    %v2281 = vsel %vm2275, %v2268, 920167782
    %v2282 = vsel %vm2274, %v2265, %v2281
    %v2283 = vsel %vm2273, %v2280, %v2282
    %v2284 = vsel %vm2272, %v2262, %v2265
    %v2285 = vsel %vm2275, %v2271, 1326507024
    %v2286 = vsel %vm2274, %v2268, %v2285
    %v2287 = vsel %vm2273, %v2284, %v2286
    %v2288 = vshll.u32 %v2248, 8
    %v2289 = vand.u32 %v2288, 65535
    %v2290 = vshrl.u32 %v2288, 16
    %v2291 = vand.u32 %v2287, 65535
    %v2292 = vshrl.u32 %v2287, 16
    %v2293 = vmul.u32 %v2289, %v2291
    %v2294 = vmul.u32 %v2289, %v2292
    %v2295 = vmul.u32 %v2290, %v2291
    %v2296 = vmul.u32 %v2290, %v2292
    %v2297 = vshll.u32 %v2294, 16
    %v2298 = vshrl.u32 %v2294, 16
    %v2299 = vshll.u32 %v2295, 16
    %v2300 = vshrl.u32 %v2295, 16
    %vm2301 = vc.u32 %v2293, %v2297
    %v2302 = vsel %vm2301, 1, 0
    %v2303 = vadd.s32 %v2293, %v2297
    %v2304 = vadd.s32 %v2296, %v2302
    %vm2305 = vc.u32 %v2303, %v2299
    %v2306 = vsel %vm2305, 1, 0
    %v2307 = vadd.s32 %v2303, %v2299
    %v2308 = vadd.s32 %v2304, %v2306
    %v2309 = vadd.s32 %v2308, %v2298
    %v2310 = vadd.s32 %v2309, %v2300
    %v2311 = vand.u32 %v2288, 65535
    %v2312 = vshrl.u32 %v2288, 16
    %v2313 = vand.u32 %v2283, 65535
    %v2314 = vshrl.u32 %v2283, 16
    %v2315 = vmul.u32 %v2311, %v2313
    %v2316 = vmul.u32 %v2311, %v2314
    %v2317 = vmul.u32 %v2312, %v2313
    %v2318 = vmul.u32 %v2312, %v2314
    %v2319 = vshll.u32 %v2316, 16
    %v2320 = vshrl.u32 %v2316, 16
    %v2321 = vshll.u32 %v2317, 16
    %v2322 = vshrl.u32 %v2317, 16
    %vm2323 = vc.u32 %v2315, %v2319
    %v2324 = vsel %vm2323, 1, 0
    %v2325 = vadd.s32 %v2315, %v2319
    %v2326 = vadd.s32 %v2318, %v2324
    %vm2327 = vc.u32 %v2325, %v2321
    %v2328 = vsel %vm2327, 1, 0
    %v2329 = vadd.s32 %v2325, %v2321
    %v2330 = vadd.s32 %v2326, %v2328
    %v2331 = vadd.s32 %v2330, %v2320
    %v2332 = vadd.s32 %v2331, %v2322
    %v2333 = vmul.u32 %v2288, %v2279
    %v2334 = vadd.s32 %v2310, %v2329
    %vm2335 = vc.u32 %v2310, %v2329
    %v2336 = vadd.s32 %v2332, 1
    %v2337 = vsel %vm2335, %v2336, %v2332
    %v2338 = vadd.s32 %v2333, %v2337
    %v2339 = vadd.s32 %v2338, 536870912
    %v2340 = vshrl.u32 %v2339, 30
    %v2341 = vshll.u32 %v2340, 30
    %v2342 = vsub.s32 %v2338, %v2341
    %vm2343 = vcmp.lt.s32.totalorder %v2342, 0
    %v2344 = vsub.s32 0, %v2342
    %v2345 = vsel %vm2343, %v2344, %v2342
    %v2346 = vclz %v2345
    %v2347 = vsub.s32 %v2346, 2
    %vm2348 = vcmp.gt.s32.totalorder 0, %v2347
    %v2349 = vsel %vm2348, 0, %v2347
    %v2350 = vsub.s32 32, %v2349
    %v2351 = vshll.u32 %v2342, %v2349
    %v2352 = vshrl.u32 %v2334, %v2350
    %v2353 = vor.u32 %v2351, %v2352
    %v2354 = vsub.s32 4294967266, %v2349
    %v2355 = vadd.s32 %v2354, 127
    %v2356 = vshll.u32 %v2355, 23
    %v2357 = vor.u32 4788187, %v2356
    %v2358 = vand.u32 2147483647, %v2357
    %v2360 = vcvt.s32.f32 %v2353
    %v2361 = vmul.f32 %v2360, %v2358
    %v2362 = vxor.u32 %v2361, 2147483648
    %v2363 = vsel %vm2242, %v2362, %v2361
    %v2364 = vsub.s32 4, %v2340
    %v2365 = vsel %vm2242, %v2364, %v2340
    %v2366 = vsel %vm2241, %v74, %v2363
    %v2367 = vsel %vm2241, 0, %v2365
    %v2368 = vmul.f32 %v2366, %v2366
    %v2369 = vmul.f32 %v2368, -0.001358992
    %v2370 = vadd.f32 %v2369, 0.041655596
    %v2371 = vmul.f32 %v2368, %v2370
    %v2372 = vadd.f32 %v2371, -0.4999988
    %v2373 = vmul.f32 %v2368, %v2372
    %v2374 = vadd.f32 1.0, %v2373
    %v2375 = vmul.f32 %v2366, %v2366
    %v2376 = vmul.f32 %v2375, -0.00019511016
    %v2377 = vadd.f32 %v2376, 0.008332121
    %v2378 = vmul.f32 %v2375, %v2377
    %v2379 = vadd.f32 %v2378, -0.16666654
    %v2380 = vmul.f32 %v2375, %v2379
    %v2381 = vadd.f32 %v2380, 1.0
    %v2382 = vmul.f32 %v2381, %v2366
    %vm2383 = vweird.f32 %v74
    %v2384 = vand.u32 %v2367, 3
    %vm2385 = vcmp.lt.s32.totalorder %v2384, 2
    %vm2386 = vcmp.eq.s32.totalorder %v2384, 0
    %v2387 = vxor.u32 %v2382, 2147483648
    %v2388 = vsel %vm2386, %v2374, %v2387
    %vm2389 = vcmp.eq.s32.totalorder %v2384, 2
    %v2390 = vxor.u32 %v2374, 2147483648
    %v2391 = vsel %vm2389, %v2390, %v2382
    %v2392 = vsel %vm2385, %v2388, %v2391
    %v2393 = vsel %vm2383, nan, %v2392
    %v2394 = vand.u32 2147483647, %v75
    %vm2395 = vcmp.le.f32.partialorder %v2394, 0.7853982
    %vm2396 = vcmp.lt.s32.totalorder %v75, 0
    %v2397 = vand.u32 %v75, 2139095040
    %v2398 = vshrl.u32 %v2397, 23
    %v2399 = vsub.s32 %v2398, 127
    %v2400 = vand.u32 2147483647, %v75
    %v2401 = vand.u32 %v2400, 8388607
    %v2402 = vor.u32 %v2401, 8388608
    %v2403 = vsub.s32 0, %v2402
    %v2404 = vadd.s32 %v2399, 1
    %vm2405 = vcmp.gt.s32.totalorder %v2404, 0
    %v2406 = vsel %vm2405, %v2404, 0
    %v2407 = vshrl.u32 %v2406, 5
    %v2408 = vand.u32 %v2406, 31
    %v2409 = vsub.s32 32, %v2408
    %v2410 = vshrl.u32 683565275, %v2409
    %v2411 = vshll.u32 683565275, %v2408
    %v2412 = vshrl.u32 2475754826, %v2409
    %v2413 = vor.u32 %v2411, %v2412
    %v2414 = vshll.u32 2475754826, %v2408
    %v2415 = vshrl.u32 2131351028, %v2409
    %v2416 = vor.u32 %v2414, %v2415
    %v2417 = vshll.u32 2131351028, %v2408
    %v2418 = vshrl.u32 2102212464, %v2409
    %v2419 = vor.u32 %v2417, %v2418
    %v2420 = vshll.u32 2102212464, %v2408
    %v2421 = vshrl.u32 920167782, %v2409
    %v2422 = vor.u32 %v2420, %v2421
    %v2423 = vshll.u32 920167782, %v2408
    %v2424 = vshrl.u32 1326507024, %v2409
    %v2425 = vor.u32 %v2423, %v2424
    %vm2426 = vcmp.lt.s32.totalorder %v2407, 1
    %vm2427 = vcmp.lt.s32.totalorder %v2407, 2
    %vm2428 = vcmp.lt.s32.totalorder %v2407, 3
    %vm2429 = vcmp.lt.s32.totalorder %v2407, 4
    %v2430 = vsel %vm2426, %v2410, %v2413
    %v2431 = vsel %vm2429, %v2419, 2102212464
    %v2432 = vsel %vm2428, %v2416, %v2431
    %v2433 = vsel %vm2427, %v2430, %v2432
    %v2434 = vsel %vm2426, %v2413, %v2416
    %v2435 = vsel %vm2429, %v2422, 920167782
    %v2436 = vsel %vm2428, %v2419, %v2435
    %v2437 = vsel %vm2427, %v2434, %v2436
    %v2438 = vsel %vm2426, %v2416, %v2419
    %v2439 = vsel %vm2429, %v2425, 1326507024
    %v2440 = vsel %vm2428, %v2422, %v2439
    %v2441 = vsel %vm2427, %v2438, %v2440
    %v2442 = vshll.u32 %v2402, 8
    %v2443 = vand.u32 %v2442, 65535
    %v2444 = vshrl.u32 %v2442, 16
    %v2445 = vand.u32 %v2441, 65535
    %v2446 = vshrl.u32 %v2441, 16
    %v2447 = vmul.u32 %v2443, %v2445
    %v2448 = vmul.u32 %v2443, %v2446
    %v2449 = vmul.u32 %v2444, %v2445
    %v2450 = vmul.u32 %v2444, %v2446
    %v2451 = vshll.u32 %v2448, 16
    %v2452 = vshrl.u32 %v2448, 16
    %v2453 = vshll.u32 %v2449, 16
    %v2454 = vshrl.u32 %v2449, 16
    %vm2455 = vc.u32 %v2447, %v2451
    %v2456 = vsel %vm2455, 1, 0
    %v2457 = vadd.s32 %v2447, %v2451
    %v2458 = vadd.s32 %v2450, %v2456
    %vm2459 = vc.u32 %v2457, %v2453
    %v2460 = vsel %vm2459, 1, 0
    %v2461 = vadd.s32 %v2457, %v2453
    %v2462 = vadd.s32 %v2458, %v2460
    %v2463 = vadd.s32 %v2462, %v2452
    %v2464 = vadd.s32 %v2463, %v2454
    %v2465 = vand.u32 %v2442, 65535
    %v2466 = vshrl.u32 %v2442, 16
    %v2467 = vand.u32 %v2437, 65535
    %v2468 = vshrl.u32 %v2437, 16
    %v2469 = vmul.u32 %v2465, %v2467
    %v2470 = vmul.u32 %v2465, %v2468
    %v2471 = vmul.u32 %v2466, %v2467
    %v2472 = vmul.u32 %v2466, %v2468
    %v2473 = vshll.u32 %v2470, 16
    %v2474 = vshrl.u32 %v2470, 16
    %v2475 = vshll.u32 %v2471, 16
    %v2476 = vshrl.u32 %v2471, 16
    %vm2477 = vc.u32 %v2469, %v2473
    %v2478 = vsel %vm2477, 1, 0
    %v2479 = vadd.s32 %v2469, %v2473
    %v2480 = vadd.s32 %v2472, %v2478
    %vm2481 = vc.u32 %v2479, %v2475
    %v2482 = vsel %vm2481, 1, 0
    %v2483 = vadd.s32 %v2479, %v2475
    %v2484 = vadd.s32 %v2480, %v2482
    %v2485 = vadd.s32 %v2484, %v2474
    %v2486 = vadd.s32 %v2485, %v2476
    %v2487 = vmul.u32 %v2442, %v2433
    %v2488 = vadd.s32 %v2464, %v2483
    %vm2489 = vc.u32 %v2464, %v2483
    %v2490 = vadd.s32 %v2486, 1
    %v2491 = vsel %vm2489, %v2490, %v2486
    %v2492 = vadd.s32 %v2487, %v2491
    %v2493 = vadd.s32 %v2492, 536870912
    %v2494 = vshrl.u32 %v2493, 30
    %v2495 = vshll.u32 %v2494, 30
    %v2496 = vsub.s32 %v2492, %v2495
    %vm2497 = vcmp.lt.s32.totalorder %v2496, 0
    %v2498 = vsub.s32 0, %v2496
    %v2499 = vsel %vm2497, %v2498, %v2496
    %v2500 = vclz %v2499
    %v2501 = vsub.s32 %v2500, 2
    %vm2502 = vcmp.gt.s32.totalorder 0, %v2501
    %v2503 = vsel %vm2502, 0, %v2501
    %v2504 = vsub.s32 32, %v2503
    %v2505 = vshll.u32 %v2496, %v2503
    %v2506 = vshrl.u32 %v2488, %v2504
    %v2507 = vor.u32 %v2505, %v2506
    %v2508 = vsub.s32 4294967266, %v2503
    %v2509 = vadd.s32 %v2508, 127
    %v2510 = vshll.u32 %v2509, 23
    %v2511 = vor.u32 4788187, %v2510
    %v2512 = vand.u32 2147483647, %v2511
    %v2514 = vcvt.s32.f32 %v2507
    %v2515 = vmul.f32 %v2514, %v2512
    %v2516 = vxor.u32 %v2515, 2147483648
    %v2517 = vsel %vm2396, %v2516, %v2515
    %v2518 = vsub.s32 4, %v2494
    %v2519 = vsel %vm2396, %v2518, %v2494
    %v2520 = vsel %vm2395, %v75, %v2517
    %v2521 = vsel %vm2395, 0, %v2519
    %v2522 = vmul.f32 %v2520, %v2520
    %v2523 = vmul.f32 %v2522, -0.001358992
    %v2524 = vadd.f32 %v2523, 0.041655596
    %v2525 = vmul.f32 %v2522, %v2524
    %v2526 = vadd.f32 %v2525, -0.4999988
    %v2527 = vmul.f32 %v2522, %v2526
    %v2528 = vadd.f32 1.0, %v2527
    %v2529 = vmul.f32 %v2520, %v2520
    %v2530 = vmul.f32 %v2529, -0.00019511016
    %v2531 = vadd.f32 %v2530, 0.008332121
    %v2532 = vmul.f32 %v2529, %v2531
    %v2533 = vadd.f32 %v2532, -0.16666654
    %v2534 = vmul.f32 %v2529, %v2533
    %v2535 = vadd.f32 %v2534, 1.0
    %v2536 = vmul.f32 %v2535, %v2520
    %vm2537 = vweird.f32 %v75
    %v2538 = vand.u32 %v2521, 3
    %vm2539 = vcmp.lt.s32.totalorder %v2538, 2
    %vm2540 = vcmp.eq.s32.totalorder %v2538, 0
    %v2541 = vxor.u32 %v2536, 2147483648
    %v2542 = vsel %vm2540, %v2528, %v2541
    %vm2543 = vcmp.eq.s32.totalorder %v2538, 2
    %v2544 = vxor.u32 %v2528, 2147483648
    %v2545 = vsel %vm2543, %v2544, %v2536
    %v2546 = vsel %vm2539, %v2542, %v2545
    %v2547 = vsel %vm2537, nan, %v2546
    %2548 = vxpose.xlu0.b32.start [1/16] %v230, 128
    %2549 = vxpose.xlu0.b32.cont [2/16] %v385, 128
    %2550 = vxpose.xlu0.b32.cont [3/16] %v540, 128
    %2551 = vxpose.xlu0.b32.cont [4/16] %v695, 128
    %2552 = vxpose.xlu0.b32.cont [5/16] %v850, 128
    %2553 = vxpose.xlu0.b32.cont [6/16] %v1005, 128
    %2554 = vxpose.xlu0.b32.cont [7/16] %v1160, 128
    %2555 = vxpose.xlu0.b32.cont [8/16] %v1315, 128
    %2556 = vxpose.xlu0.b32.cont [9/16] %v1469, 128
    %2557 = vxpose.xlu0.b32.cont [10/16] %v1623, 128
    %2558 = vxpose.xlu0.b32.cont [11/16] %v1777, 128
    %2559 = vxpose.xlu0.b32.cont [12/16] %v1931, 128
    %2560 = vxpose.xlu0.b32.cont [13/16] %v2085, 128
    %2561 = vxpose.xlu0.b32.cont [14/16] %v2239, 128
    %2562 = vxpose.xlu0.b32.cont [15/16] %v2393, 128
    %2563 = vxpose.xlu0.b32.end [16/16] %v2547, 128
    %v2564 = vpop.trf.xlu0
    %v2565 = vpop.trf.xlu0
    %v2566 = vpop.trf.xlu0
    %v2567 = vpop.trf.xlu0
    %v2568 = vpop.trf.xlu0
    %v2569 = vpop.trf.xlu0
    %v2570 = vpop.trf.xlu0
    %v2571 = vpop.trf.xlu0
    %v2572 = vpop.trf.xlu0
    %v2573 = vpop.trf.xlu0
    %v2574 = vpop.trf.xlu0
    %v2575 = vpop.trf.xlu0
    %v2576 = vpop.trf.xlu0
    %v2577 = vpop.trf.xlu0
    %v2578 = vpop.trf.xlu0
    %v2579 = vpop.trf.xlu0
    %2580 = vst [vmem:[#allocation5] sm:$0xff] %v2564
    %2581 = vst [vmem:[#allocation5 + $0x8] sm:$0xff] %v2565
    %2582 = vst [vmem:[#allocation5 + $0x10] sm:$0xff] %v2566
    %2583 = vst [vmem:[#allocation5 + $0x18] sm:$0xff] %v2567
    %2584 = vst [vmem:[#allocation5 + $0x20] sm:$0xff] %v2568
    %2585 = vst [vmem:[#allocation5 + $0x28] sm:$0xff] %v2569
    %2586 = vst [vmem:[#allocation5 + $0x30] sm:$0xff] %v2570
    %2587 = vst [vmem:[#allocation5 + $0x38] sm:$0xff] %v2571
    %2588 = vst [vmem:[#allocation5 + $0x40] sm:$0xff] %v2572
    %2589 = vst [vmem:[#allocation5 + $0x48] sm:$0xff] %v2573
    %2590 = vst [vmem:[#allocation5 + $0x50] sm:$0xff] %v2574
    %2591 = vst [vmem:[#allocation5 + $0x58] sm:$0xff] %v2575
    %2592 = vst [vmem:[#allocation5 + $0x60] sm:$0xff] %v2576
    %2593 = vst [vmem:[#allocation5 + $0x68] sm:$0xff] %v2577
    %2594 = vst [vmem:[#allocation5 + $0x70] sm:$0xff] %v2578
    %2595 = vst [vmem:[#allocation5 + $0x78] sm:$0xff] %v2579
    // Predicated region
    $region10: #{tpu_custom_call.1} parent=1 // pred_check
      _
    $region11: #{tpu_custom_call.1} parent=1 // pred_check_branch
      %2597 = sbr.rel (0) target = $region13
    $region12: #{tpu_custom_call.1} parent=1 // pred_region
      %2599 = vsyncadd [#allocation4], 0
      %s2600 = sshll.u32 [#allocation5], 4
      %s2601 = int_to_ptr.vmem [resolvable:$true] %s2600
      %s2602 = sshll.u32 %s1, 4
      %s2603 = int_to_ptr.hbm [resolvable:$true] %s2602
      %2608 = dma.vmem_to_hbm [thread:$0]  %s2601, 2048, %s2603, [#allocation4], 128, 128, 8
    $region13: #{tpu_custom_call.1} parent=1 // pred_fallthru
      _
    // Predicated region
    $region14: #{tpu_custom_call.1} parent=1 // pred_check
      _
    $region15: #{tpu_custom_call.1} parent=1 // pred_check_branch
      %2610 = sbr.rel (0) target = $region17
    $region16: #{tpu_custom_call.1} parent=1 // pred_region
      %2612 = dma.done [#allocation4], 2048
    $region17: #{tpu_custom_call.1} parent=1 // pred_fallthru
      _
    %2613 = vsyncpa [#allocation3], 1
    %2614 = vsyncpa [#allocation4], 1

</llo_original>
